<compile_context>
chip_gen: v7x
topology: tpu7x:2x2x1
jax: 0.10.0
libtpu: 0.0.40
codegen_flags: <defaults>
</compile_context>

<pallas_src>
import functools

import jax
import jax.numpy as jnp
from jax.experimental import pallas as pl
from jax.experimental.pallas import tpu as pltpu


def _round_up(x, m):
    return ((x + m - 1) // m) * m


def _vmem_capacity_bytes():
    """Physical per-core VMEM (128 MiB v5e/v6e, 64 MiB v7x); conservative fallback."""
    try:
        info = pltpu.get_tpu_info()
        cap = int(getattr(info, "vmem_capacity_bytes", 0) or 0)
        if cap > 0:
            return cap
    except Exception:
        pass
    return 64 * 1024 * 1024


def _compiler_params(vmem_limit_bytes):
    """TPU compiler params, tolerating older/newer pltpu class names."""
    cls = getattr(pltpu, "CompilerParams", None)
    if cls is None:
        cls = getattr(pltpu, "TPUCompilerParams", None)
    if cls is None:
        return None
    try:
        return cls(dimension_semantics=("parallel",),
                   vmem_limit_bytes=int(vmem_limit_bytes))
    except TypeError:
        return cls(dimension_semantics=("parallel",))


def _choose_batch_tile(n, l, c_in, c_out_pad, filter_sizes, itemsize, budget_bytes):
    """Largest batch tile TN whose per-step VMEM demand fits the budget.

    Accounts for: input/output blocks x2 (BlockSpec double-buffering), weight and
    bias blocks x1 (single-buffered, constant index_map), per-filter f32
    accumulator and current-tap slice temporaries. Uses the actual dtype size.
    """
    fixed = 0
    for fs in filter_sizes:
        fixed += (fs * c_in * c_out_pad + c_out_pad) * itemsize      # weights+bias x1

    per_n = 2 * l * c_in * itemsize                                  # input block x2
    for fs in filter_sizes:
        l_out = l - fs + 1
        per_n += 2 * l_out * c_out_pad * itemsize                    # output block x2
        per_n += l_out * c_out_pad * 4                               # f32 accumulator
        per_n += l_out * c_in * itemsize                             # current tap slice

    avail = max(budget_bytes - fixed, per_n)
    tn = max(1, int(avail // per_n))
    tn = min(tn, n)
    if n >= 2:
        # Guarantee >= 2 grid steps: megacore sharding (v7x) + pipeline overlap.
        tn = min(tn, -(-n // 2))
    return tn


def _fused_conv1d_relu_kernel(x_ref, *refs, filter_sizes, c_in, use_im2col):
    """Fused multi-filter-size Conv1d + bias + ReLU.

    x_ref:            (TN, L, C_in)            channels-last input tile
    refs[:nf]:        (fs*C_in, C_out_pad)     tap-major flattened weights, per fs
    refs[nf:2nf]:     (1, C_out_pad)           f32 biases, per fs
    refs[2nf:]:       (TN, L_out_fs, C_out_pad) channels-last output tiles
    """
    nf = len(filter_sizes)
    w_refs = refs[:nf]
    b_refs = refs[nf:2 * nf]
    o_refs = refs[2 * nf:]

    l_in = x_ref.shape[1]
    dnums = (((2,), (0,)), ((), ()))

    for idx, fs in enumerate(filter_sizes):
        l_out = l_in - fs + 1
        w_ref = w_refs[idx]

        if use_im2col and fs > 1:
            # Small C_in: stack the fs shifted windows (read straight from the ref)
            # so the conv is one K = fs*C_in MXU contraction.
            x_win = jnp.concatenate(
                [x_ref[:, pl.ds(k, l_out), :] for k in range(fs)], axis=-1)
            acc = jax.lax.dot_general(
                x_win, w_ref[...], dimension_numbers=dnums,
                preferred_element_type=jnp.float32)
        else:
            # Large C_in: K = C_in already saturates the MXU. Accumulate over the
            # fs taps with ref-sliced operands — no im2col temporary, no full-tile
            # register load, native-dtype inputs with f32 accumulation.
            acc = jax.lax.dot_general(
                x_ref[:, pl.ds(0, l_out), :],
                w_ref[pl.ds(0, c_in), :],
                dimension_numbers=dnums,
                preferred_element_type=jnp.float32)
            for k in range(1, fs):
                acc = acc + jax.lax.dot_general(
                    x_ref[:, pl.ds(k, l_out), :],
                    w_ref[pl.ds(k * c_in, c_in), :],
                    dimension_numbers=dnums,
                    preferred_element_type=jnp.float32)

        acc = acc + b_refs[idx][...].astype(jnp.float32)
        o_refs[idx][...] = jnp.maximum(acc, 0.0).astype(o_refs[idx].dtype)


def conv1d_relu_fused(x, weights, biases, filter_sizes, *, im2col_max_cin=128):
    """x: (N, C_in, L) NCW; weights[i]: (C_out, C_in, fs_i); biases[i]: (C_out,).

    Returns a list of (N, C_out, L - fs_i + 1) arrays with ReLU applied,
    matching the PyTorch module's forward().
    """
    filter_sizes = tuple(int(f) for f in filter_sizes)
    n, c_in, l = x.shape
    c_out = int(weights[0].shape[0])

    # Lane-dense padding only pays off for large C_out; for small C_out padding to
    # 128 wastes up to 16x output-store HBM bandwidth (worst on v5e).
    if c_out >= 128 and c_out % 128 != 0:
        c_out_pad = _round_up(c_out, 128)
    else:
        c_out_pad = c_out

    compute_dtype = x.dtype
    itemsize = jnp.dtype(compute_dtype).itemsize

    # TODO(synk): BERT activations are naturally (N, L, C); accepting NLC input
    # directly would remove this extra HBM read+write of x before the kernel.
    x_nlc = jnp.transpose(x, (0, 2, 1))                 # NCW -> NLC (channels on lanes)

    cap = _vmem_capacity_bytes()
    vmem_limit = (3 * cap) // 4                         # ~96 MiB v5e/v6e, ~48 MiB v7x
    tile_budget = cap // 2                              # headroom under the limit

    tn = _choose_batch_tile(n, l, c_in, c_out_pad, filter_sizes, itemsize, tile_budget)
    n_pad = _round_up(n, tn)
    if n_pad != n:
        x_nlc = jnp.pad(x_nlc, ((0, n_pad - n), (0, 0), (0, 0)))

    # Flatten weights to (fs*C_in, C_out_pad), tap-major, matching the in-kernel
    # tap/im2col ordering. Feed the MXU its native dtype (bf16 stays bf16).
    w_flats, b_pads = [], []
    for fs, w, b in zip(filter_sizes, weights, biases):
        w_kio = jnp.transpose(w, (2, 1, 0)).reshape(fs * c_in, c_out)
        if c_out_pad != c_out:
            w_kio = jnp.pad(w_kio, ((0, 0), (0, c_out_pad - c_out)))
        w_flats.append(w_kio.astype(compute_dtype))
        b_p = b if c_out_pad == c_out else jnp.pad(b, (0, c_out_pad - c_out))
        b_pads.append(b_p.astype(jnp.float32).reshape(1, c_out_pad))

    l_outs = [l - fs + 1 for fs in filter_sizes]
    grid = (n_pad // tn,)
    out_shape = tuple(jax.ShapeDtypeStruct((n_pad, lo, c_out_pad), compute_dtype)
                      for lo in l_outs)

    use_im2col = c_in < im2col_max_cin
    kernel = functools.partial(_fused_conv1d_relu_kernel,
                               filter_sizes=filter_sizes, c_in=c_in,
                               use_im2col=use_im2col)

    # Advisory cost estimate so XLA can schedule surrounding ops around the call.
    flops = 0
    bytes_accessed = n_pad * l * c_in * itemsize
    for fs, lo in zip(filter_sizes, l_outs):
        flops += 2 * n_pad * lo * fs * c_in * c_out_pad
        bytes_accessed += fs * c_in * c_out_pad * itemsize + c_out_pad * 4
        bytes_accessed += n_pad * lo * c_out_pad * itemsize

    def build(single_buffer_consts):
        const_kw = {}
        if single_buffer_consts and hasattr(pl, "Buffered"):
            # Weights/biases have a constant index_map -> no need to double-buffer.
            const_kw = dict(pipeline_mode=pl.Buffered(1))
        in_specs = [pl.BlockSpec((tn, l, c_in), lambda i: (i, 0, 0))]
        in_specs += [pl.BlockSpec((fs * c_in, c_out_pad), lambda i: (0, 0), **const_kw)
                     for fs in filter_sizes]
        in_specs += [pl.BlockSpec((1, c_out_pad), lambda i: (0, 0), **const_kw)
                     for _ in filter_sizes]
        out_specs = tuple(pl.BlockSpec((tn, lo, c_out_pad), lambda i: (i, 0, 0))
                          for lo in l_outs)
        kwargs = dict(grid=grid, in_specs=in_specs, out_specs=out_specs,
                      out_shape=out_shape)
        cp = _compiler_params(vmem_limit)
        if cp is not None:
            kwargs["compiler_params"] = cp
        if hasattr(pl, "CostEstimate"):
            try:
                kwargs["cost_estimate"] = pl.CostEstimate(
                    flops=int(flops), transcendentals=0,
                    bytes_accessed=int(bytes_accessed))
            except Exception:
                pass
        return pl.pallas_call(kernel, **kwargs)

    try:
        outs = build(True)(x_nlc, *w_flats, *b_pads)
    except Exception:
        # Fallback for jax versions without pipeline_mode / Buffered(1) support.
        outs = build(False)(x_nlc, *w_flats, *b_pads)

    # TODO(synk): BertCNN applies max_pool1d over L right after this module; fusing
    # the pool in-kernel would cut output HBM traffic ~L_out-fold, but it is outside
    # this module's forward() contract (which must return the full feature maps).
    results = []
    for o in outs:
        o = o[:n, :, :c_out]                            # strip batch/channel padding
        results.append(jnp.transpose(o, (0, 2, 1)))     # NLC -> NCW (PyTorch layout)
    return results


class Conv1dPallas:
    """JAX/Pallas port of the PyTorch Conv1d module (list of 1-D convs + ReLU)."""

    def __init__(self, in_channels, out_channels, filter_sizes, key):
        self.filter_sizes = tuple(int(f) for f in filter_sizes)
        self.weights = []   # PyTorch layout: (C_out, C_in, fs)
        self.biases = []    # (C_out,)
        for i, fs in enumerate(self.filter_sizes):
            k = jax.random.fold_in(key, i)
            # xavier_uniform_ on a Conv1d weight: fan_in = C_in*fs, fan_out = C_out*fs
            fan_in = in_channels * fs
            fan_out = out_channels * fs
            bound = (6.0 / (fan_in + fan_out)) ** 0.5
            w = jax.random.uniform(
                k, (out_channels, in_channels, fs),
                minval=-bound, maxval=bound, dtype=jnp.float32)
            b = jnp.full((out_channels,), 0.1, dtype=jnp.float32)
            self.weights.append(w)
            self.biases.append(b)

    def __call__(self, x):
        """x: (N, C_in, L)  ->  list of (N, C_out, L - fs + 1), ReLU applied."""
        return conv1d_relu_fused(x, self.weights, self.biases, self.filter_sizes)


def _reference_conv_relu(x, w, b):
    """Pure-JAX reference matching PyTorch F.relu(nn.Conv1d(...)(x))."""
    y = jax.lax.conv_general_dilated(
        x, w, window_strides=(1,), padding='VALID',
        dimension_numbers=('NCH', 'OIH', 'NCH'))
    return jnp.maximum(y + b[None, :, None], 0.0)


if __name__ == "__main__":
    key = jax.random.PRNGKey(0)

    # Small shapes consistent with the module's forward: x is (N, C_in, L).
    N, C_in, L = 2, 4, 16
    C_out = 8
    filter_sizes = (2, 3, 4)

    x = jax.random.normal(jax.random.fold_in(key, 123), (N, C_in, L),
                          dtype=jnp.float32)

    model = Conv1dPallas(C_in, C_out, filter_sizes, key)

    # Default path (im2col, taken when C_in < 128).
    outs = model(x)
    outs = [jax.block_until_ready(o) for o in outs]

    # Tap-accumulation path (taken when C_in >= 128) — force it so both code
    # paths are compiled and numerically checked.
    outs_tap = conv1d_relu_fused(x, model.weights, model.biases, filter_sizes,
                                 im2col_max_cin=1)
    outs_tap = [jax.block_until_ready(o) for o in outs_tap]

    # Sanity check against a pure-JAX reference of the PyTorch forward.
    for fs, w, b, o, ot in zip(filter_sizes, model.weights, model.biases,
                               outs, outs_tap):
        assert o.shape == (N, C_out, L - fs + 1), o.shape
        assert ot.shape == (N, C_out, L - fs + 1), ot.shape
        ref = _reference_conv_relu(x, w, b)
        assert jnp.allclose(o, ref, atol=1e-5, rtol=1e-5), f"mismatch (im2col) fs={fs}"
        assert jnp.allclose(ot, ref, atol=1e-5, rtol=1e-5), f"mismatch (tap) fs={fs}"

    print("KERNEL_OK")
</pallas_src>

<mosaic_0001>
module attributes {stable_mosaic.version = 11 : i64} {
  func.func @_fused_conv1d_relu_kernel(%arg0: i32, %arg1: memref<1x16x4xf32, #tpu.memory_space<vmem>>, %arg2: memref<8x8xf32, #tpu.memory_space<vmem>>, %arg3: memref<12x8xf32, #tpu.memory_space<vmem>>, %arg4: memref<16x8xf32, #tpu.memory_space<vmem>>, %arg5: memref<1x8xf32, #tpu.memory_space<vmem>>, %arg6: memref<1x8xf32, #tpu.memory_space<vmem>>, %arg7: memref<1x8xf32, #tpu.memory_space<vmem>>, %arg8: memref<1x15x8xf32, #tpu.memory_space<vmem>>, %arg9: memref<1x14x8xf32, #tpu.memory_space<vmem>>, %arg10: memref<1x13x8xf32, #tpu.memory_space<vmem>>) attributes {dimension_semantics = [#tpu.dimension_semantics<parallel>], iteration_bounds = array<i64: 2>, scalar_prefetch = 0 : i64, scratch_operands = 0 : i64, tpu.core_type = #tpu.core_type<tc>, window_params = [{transform_indices = @transform_0, window_bounds = array<i64: 1, 16, 4>}, {pipeline_mode = #tpu.pipeline_mode<synchronous>, transform_indices = @transform_1, window_bounds = array<i64: 8, 8>}, {pipeline_mode = #tpu.pipeline_mode<synchronous>, transform_indices = @transform_2, window_bounds = array<i64: 12, 8>}, {pipeline_mode = #tpu.pipeline_mode<synchronous>, transform_indices = @transform_3, window_bounds = array<i64: 16, 8>}, {pipeline_mode = #tpu.pipeline_mode<synchronous>, transform_indices = @transform_4, window_bounds = array<i64: 1, 8>}, {pipeline_mode = #tpu.pipeline_mode<synchronous>, transform_indices = @transform_5, window_bounds = array<i64: 1, 8>}, {pipeline_mode = #tpu.pipeline_mode<synchronous>, transform_indices = @transform_6, window_bounds = array<i64: 1, 8>}, {transform_indices = @transform_7, window_bounds = array<i64: 1, 15, 8>}, {transform_indices = @transform_8, window_bounds = array<i64: 1, 14, 8>}, {transform_indices = @transform_9, window_bounds = array<i64: 1, 13, 8>}]} {
    %c0 = arith.constant 0 : index
    %c0_0 = arith.constant 0 : index
    %c0_1 = arith.constant 0 : index
    %0 = vector.load %arg1[%c0, %c0_0, %c0_1] : memref<1x16x4xf32, #tpu.memory_space<vmem>>, vector<1x15x4xf32>
    %c0_2 = arith.constant 0 : index
    %c1 = arith.constant 1 : index
    %c0_3 = arith.constant 0 : index
    %1 = vector.load %arg1[%c0_2, %c1, %c0_3] : memref<1x16x4xf32, #tpu.memory_space<vmem>>, vector<1x15x4xf32>
    %2 = tpu.concatenate %0, %1 in 2 : vector<1x15x4xf32>, vector<1x15x4xf32> -> vector<1x15x8xf32>
    %c0_4 = arith.constant 0 : index
    %c0_5 = arith.constant 0 : index
    %3 = vector.load %arg2[%c0_4, %c0_5] : memref<8x8xf32, #tpu.memory_space<vmem>>, vector<8x8xf32>
    %cst = arith.constant dense<0.000000e+00> : vector<1x15x8xf32>
    %4 = tpu.matmul %2, %3, %cst {dimension_numbers = #tpu.dot_dimension_numbers<[2], [0], [0, 1], [1], [0, 0, 0, 1, 1, 1], [], []>} : vector<1x15x8xf32>, vector<8x8xf32>, vector<1x15x8xf32> -> vector<1x15x8xf32>
    %c0_6 = arith.constant 0 : index
    %c0_7 = arith.constant 0 : index
    %5 = vector.load %arg5[%c0_6, %c0_7] : memref<1x8xf32, #tpu.memory_space<vmem>>, vector<1x8xf32>
    %6 = vector.shape_cast %5 : vector<1x8xf32> to vector<1x1x8xf32>
    %7 = vector.broadcast %6 : vector<1x1x8xf32> to vector<1x15x8xf32>
    %8 = arith.addf %4, %7 : vector<1x15x8xf32>
    %cst_8 = arith.constant 0.000000e+00 : f32
    %9 = vector.broadcast %cst_8 : f32 to vector<1x15x8xf32>
    %10 = arith.maximumf %8, %9 : vector<1x15x8xf32>
    %c0_9 = arith.constant 0 : index
    %c0_10 = arith.constant 0 : index
    %c0_11 = arith.constant 0 : index
    %11 = vector.load %arg8[%c0_9, %c0_10, %c0_11] : memref<1x15x8xf32, #tpu.memory_space<vmem>>, vector<1x15x8xf32>
    tpu.vector_store %arg8[%c0_9, %c0_10, %c0_11], %10 {strides = array<i32>} : memref<1x15x8xf32, #tpu.memory_space<vmem>>, vector<1x15x8xf32>,
    %c0_12 = arith.constant 0 : index
    %c0_13 = arith.constant 0 : index
    %c0_14 = arith.constant 0 : index
    %12 = vector.load %arg1[%c0_12, %c0_13, %c0_14] : memref<1x16x4xf32, #tpu.memory_space<vmem>>, vector<1x14x4xf32>
    %c0_15 = arith.constant 0 : index
    %c1_16 = arith.constant 1 : index
    %c0_17 = arith.constant 0 : index
    %13 = vector.load %arg1[%c0_15, %c1_16, %c0_17] : memref<1x16x4xf32, #tpu.memory_space<vmem>>, vector<1x14x4xf32>
    %c0_18 = arith.constant 0 : index
    %c2 = arith.constant 2 : index
    %c0_19 = arith.constant 0 : index
    %14 = vector.load %arg1[%c0_18, %c2, %c0_19] : memref<1x16x4xf32, #tpu.memory_space<vmem>>, vector<1x14x4xf32>
    %15 = tpu.concatenate %12, %13, %14 in 2 : vector<1x14x4xf32>, vector<1x14x4xf32>, vector<1x14x4xf32> -> vector<1x14x12xf32>
    %c0_20 = arith.constant 0 : index
    %c0_21 = arith.constant 0 : index
    %16 = vector.load %arg3[%c0_20, %c0_21] : memref<12x8xf32, #tpu.memory_space<vmem>>, vector<12x8xf32>
    %cst_22 = arith.constant dense<0.000000e+00> : vector<1x14x8xf32>
    %17 = tpu.matmul %15, %16, %cst_22 {dimension_numbers = #tpu.dot_dimension_numbers<[2], [0], [0, 1], [1], [0, 0, 0, 1, 1, 1], [], []>} : vector<1x14x12xf32>, vector<12x8xf32>, vector<1x14x8xf32> -> vector<1x14x8xf32>
    %c0_23 = arith.constant 0 : index
    %c0_24 = arith.constant 0 : index
    %18 = vector.load %arg6[%c0_23, %c0_24] : memref<1x8xf32, #tpu.memory_space<vmem>>, vector<1x8xf32>
    %19 = vector.shape_cast %18 : vector<1x8xf32> to vector<1x1x8xf32>
    %20 = vector.broadcast %19 : vector<1x1x8xf32> to vector<1x14x8xf32>
    %21 = arith.addf %17, %20 : vector<1x14x8xf32>
    %cst_25 = arith.constant 0.000000e+00 : f32
    %22 = vector.broadcast %cst_25 : f32 to vector<1x14x8xf32>
    %23 = arith.maximumf %21, %22 : vector<1x14x8xf32>
    %c0_26 = arith.constant 0 : index
    %c0_27 = arith.constant 0 : index
    %c0_28 = arith.constant 0 : index
    %24 = vector.load %arg9[%c0_26, %c0_27, %c0_28] : memref<1x14x8xf32, #tpu.memory_space<vmem>>, vector<1x14x8xf32>
    tpu.vector_store %arg9[%c0_26, %c0_27, %c0_28], %23 {strides = array<i32>} : memref<1x14x8xf32, #tpu.memory_space<vmem>>, vector<1x14x8xf32>,
    %c0_29 = arith.constant 0 : index
    %c0_30 = arith.constant 0 : index
    %c0_31 = arith.constant 0 : index
    %25 = vector.load %arg1[%c0_29, %c0_30, %c0_31] : memref<1x16x4xf32, #tpu.memory_space<vmem>>, vector<1x13x4xf32>
    %c0_32 = arith.constant 0 : index
    %c1_33 = arith.constant 1 : index
    %c0_34 = arith.constant 0 : index
    %26 = vector.load %arg1[%c0_32, %c1_33, %c0_34] : memref<1x16x4xf32, #tpu.memory_space<vmem>>, vector<1x13x4xf32>
    %c0_35 = arith.constant 0 : index
    %c2_36 = arith.constant 2 : index
    %c0_37 = arith.constant 0 : index
    %27 = vector.load %arg1[%c0_35, %c2_36, %c0_37] : memref<1x16x4xf32, #tpu.memory_space<vmem>>, vector<1x13x4xf32>
    %c0_38 = arith.constant 0 : index
    %c3 = arith.constant 3 : index
    %c0_39 = arith.constant 0 : index
    %28 = vector.load %arg1[%c0_38, %c3, %c0_39] : memref<1x16x4xf32, #tpu.memory_space<vmem>>, vector<1x13x4xf32>
    %29 = tpu.concatenate %25, %26, %27, %28 in 2 : vector<1x13x4xf32>, vector<1x13x4xf32>, vector<1x13x4xf32>, vector<1x13x4xf32> -> vector<1x13x16xf32>
    %c0_40 = arith.constant 0 : index
    %c0_41 = arith.constant 0 : index
    %30 = vector.load %arg4[%c0_40, %c0_41] : memref<16x8xf32, #tpu.memory_space<vmem>>, vector<16x8xf32>
    %cst_42 = arith.constant dense<0.000000e+00> : vector<1x13x8xf32>
    %31 = tpu.matmul %29, %30, %cst_42 {dimension_numbers = #tpu.dot_dimension_numbers<[2], [0], [0, 1], [1], [0, 0, 0, 1, 1, 1], [], []>} : vector<1x13x16xf32>, vector<16x8xf32>, vector<1x13x8xf32> -> vector<1x13x8xf32>
    %c0_43 = arith.constant 0 : index
    %c0_44 = arith.constant 0 : index
    %32 = vector.load %arg7[%c0_43, %c0_44] : memref<1x8xf32, #tpu.memory_space<vmem>>, vector<1x8xf32>
    %33 = vector.shape_cast %32 : vector<1x8xf32> to vector<1x1x8xf32>
    %34 = vector.broadcast %33 : vector<1x1x8xf32> to vector<1x13x8xf32>
    %35 = arith.addf %31, %34 : vector<1x13x8xf32>
    %cst_45 = arith.constant 0.000000e+00 : f32
    %36 = vector.broadcast %cst_45 : f32 to vector<1x13x8xf32>
    %37 = arith.maximumf %35, %36 : vector<1x13x8xf32>
    %c0_46 = arith.constant 0 : index
    %c0_47 = arith.constant 0 : index
    %c0_48 = arith.constant 0 : index
    %38 = vector.load %arg10[%c0_46, %c0_47, %c0_48] : memref<1x13x8xf32, #tpu.memory_space<vmem>>, vector<1x13x8xf32>
    tpu.vector_store %arg10[%c0_46, %c0_47, %c0_48], %37 {strides = array<i32>} : memref<1x13x8xf32, #tpu.memory_space<vmem>>, vector<1x13x8xf32>,
    return
  }
  func.func @transform_0(%arg0: i32) -> (i32, i32, i32) {
    %c0_i32 = arith.constant 0 : i32
    %c0_i32_0 = arith.constant 0 : i32
    %c0_i32_1 = arith.constant 0 : i32
    return %arg0, %c0_i32, %c0_i32_0 : i32, i32, i32
  }
  func.func @transform_1(%arg0: i32) -> (i32, i32) {
    %c0_i32 = arith.constant 0 : i32
    %c0_i32_0 = arith.constant 0 : i32
    %c0_i32_1 = arith.constant 0 : i32
    return %c0_i32, %c0_i32_0 : i32, i32
  }
  func.func @transform_2(%arg0: i32) -> (i32, i32) {
    %c0_i32 = arith.constant 0 : i32
    %c0_i32_0 = arith.constant 0 : i32
    %c0_i32_1 = arith.constant 0 : i32
    return %c0_i32, %c0_i32_0 : i32, i32
  }
  func.func @transform_3(%arg0: i32) -> (i32, i32) {
    %c0_i32 = arith.constant 0 : i32
    %c0_i32_0 = arith.constant 0 : i32
    %c0_i32_1 = arith.constant 0 : i32
    return %c0_i32, %c0_i32_0 : i32, i32
  }
  func.func @transform_4(%arg0: i32) -> (i32, i32) {
    %c0_i32 = arith.constant 0 : i32
    %c0_i32_0 = arith.constant 0 : i32
    %c0_i32_1 = arith.constant 0 : i32
    return %c0_i32, %c0_i32_0 : i32, i32
  }
  func.func @transform_5(%arg0: i32) -> (i32, i32) {
    %c0_i32 = arith.constant 0 : i32
    %c0_i32_0 = arith.constant 0 : i32
    %c0_i32_1 = arith.constant 0 : i32
    return %c0_i32, %c0_i32_0 : i32, i32
  }
  func.func @transform_6(%arg0: i32) -> (i32, i32) {
    %c0_i32 = arith.constant 0 : i32
    %c0_i32_0 = arith.constant 0 : i32
    %c0_i32_1 = arith.constant 0 : i32
    return %c0_i32, %c0_i32_0 : i32, i32
  }
  func.func @transform_7(%arg0: i32) -> (i32, i32, i32) {
    %c0_i32 = arith.constant 0 : i32
    %c0_i32_0 = arith.constant 0 : i32
    %c0_i32_1 = arith.constant 0 : i32
    return %arg0, %c0_i32, %c0_i32_0 : i32, i32, i32
  }
  func.func @transform_8(%arg0: i32) -> (i32, i32, i32) {
    %c0_i32 = arith.constant 0 : i32
    %c0_i32_0 = arith.constant 0 : i32
    %c0_i32_1 = arith.constant 0 : i32
    return %arg0, %c0_i32, %c0_i32_0 : i32, i32, i32
  }
  func.func @transform_9(%arg0: i32) -> (i32, i32, i32) {
    %c0_i32 = arith.constant 0 : i32
    %c0_i32_0 = arith.constant 0 : i32
    %c0_i32_1 = arith.constant 0 : i32
    return %arg0, %c0_i32, %c0_i32_0 : i32, i32, i32
  }
}

module attributes {stable_mosaic.version = 11 : i64} {
  func.func @_fused_conv1d_relu_kernel(%arg0: i32, %arg1: memref<1x16x4xf32, #tpu.memory_space<vmem>>, %arg2: memref<8x8xf32, #tpu.memory_space<vmem>>, %arg3: memref<12x8xf32, #tpu.memory_space<vmem>>, %arg4: memref<16x8xf32, #tpu.memory_space<vmem>>, %arg5: memref<1x8xf32, #tpu.memory_space<vmem>>, %arg6: memref<1x8xf32, #tpu.memory_space<vmem>>, %arg7: memref<1x8xf32, #tpu.memory_space<vmem>>, %arg8: memref<1x15x8xf32, #tpu.memory_space<vmem>>, %arg9: memref<1x14x8xf32, #tpu.memory_space<vmem>>, %arg10: memref<1x13x8xf32, #tpu.memory_space<vmem>>) attributes {dimension_semantics = [#tpu.dimension_semantics<parallel>], iteration_bounds = array<i64: 2>, scalar_prefetch = 0 : i64, scratch_operands = 0 : i64, tpu.core_type = #tpu.core_type<tc>, window_params = [{transform_indices = @transform_0, window_bounds = array<i64: 1, 16, 4>}, {pipeline_mode = #tpu.pipeline_mode<synchronous>, transform_indices = @transform_1, window_bounds = array<i64: 8, 8>}, {pipeline_mode = #tpu.pipeline_mode<synchronous>, transform_indices = @transform_2, window_bounds = array<i64: 12, 8>}, {pipeline_mode = #tpu.pipeline_mode<synchronous>, transform_indices = @transform_3, window_bounds = array<i64: 16, 8>}, {pipeline_mode = #tpu.pipeline_mode<synchronous>, transform_indices = @transform_4, window_bounds = array<i64: 1, 8>}, {pipeline_mode = #tpu.pipeline_mode<synchronous>, transform_indices = @transform_5, window_bounds = array<i64: 1, 8>}, {pipeline_mode = #tpu.pipeline_mode<synchronous>, transform_indices = @transform_6, window_bounds = array<i64: 1, 8>}, {transform_indices = @transform_7, window_bounds = array<i64: 1, 15, 8>}, {transform_indices = @transform_8, window_bounds = array<i64: 1, 14, 8>}, {transform_indices = @transform_9, window_bounds = array<i64: 1, 13, 8>}]} {
    %c0 = arith.constant 0 : index
    %c0_0 = arith.constant 0 : index
    %c0_1 = arith.constant 0 : index
    %0 = vector.load %arg1[%c0, %c0_0, %c0_1] : memref<1x16x4xf32, #tpu.memory_space<vmem>>, vector<1x15x4xf32>
    %c0_2 = arith.constant 0 : index
    %c1 = arith.constant 1 : index
    %c0_3 = arith.constant 0 : index
    %1 = vector.load %arg1[%c0_2, %c1, %c0_3] : memref<1x16x4xf32, #tpu.memory_space<vmem>>, vector<1x15x4xf32>
    %2 = tpu.concatenate %0, %1 in 2 : vector<1x15x4xf32>, vector<1x15x4xf32> -> vector<1x15x8xf32>
    %c0_4 = arith.constant 0 : index
    %c0_5 = arith.constant 0 : index
    %3 = vector.load %arg2[%c0_4, %c0_5] : memref<8x8xf32, #tpu.memory_space<vmem>>, vector<8x8xf32>
    %cst = arith.constant dense<0.000000e+00> : vector<1x15x8xf32>
    %4 = tpu.matmul %2, %3, %cst {dimension_numbers = #tpu.dot_dimension_numbers<[2], [0], [0, 1], [1], [0, 0, 0, 1, 1, 1], [], []>} : vector<1x15x8xf32>, vector<8x8xf32>, vector<1x15x8xf32> -> vector<1x15x8xf32>
    %c0_6 = arith.constant 0 : index
    %c0_7 = arith.constant 0 : index
    %5 = vector.load %arg5[%c0_6, %c0_7] : memref<1x8xf32, #tpu.memory_space<vmem>>, vector<1x8xf32>
    %6 = vector.shape_cast %5 : vector<1x8xf32> to vector<1x1x8xf32>
    %7 = vector.broadcast %6 : vector<1x1x8xf32> to vector<1x15x8xf32>
    %8 = arith.addf %4, %7 : vector<1x15x8xf32>
    %cst_8 = arith.constant 0.000000e+00 : f32
    %9 = vector.broadcast %cst_8 : f32 to vector<1x15x8xf32>
    %10 = arith.maximumf %8, %9 : vector<1x15x8xf32>
    %c0_9 = arith.constant 0 : index
    %c0_10 = arith.constant 0 : index
    %c0_11 = arith.constant 0 : index
    %11 = vector.load %arg8[%c0_9, %c0_10, %c0_11] : memref<1x15x8xf32, #tpu.memory_space<vmem>>, vector<1x15x8xf32>
    tpu.vector_store %arg8[%c0_9, %c0_10, %c0_11], %10 {strides = array<i32>} : memref<1x15x8xf32, #tpu.memory_space<vmem>>, vector<1x15x8xf32>,
    %c0_12 = arith.constant 0 : index
    %c0_13 = arith.constant 0 : index
    %c0_14 = arith.constant 0 : index
    %12 = vector.load %arg1[%c0_12, %c0_13, %c0_14] : memref<1x16x4xf32, #tpu.memory_space<vmem>>, vector<1x14x4xf32>
    %c0_15 = arith.constant 0 : index
    %c1_16 = arith.constant 1 : index
    %c0_17 = arith.constant 0 : index
    %13 = vector.load %arg1[%c0_15, %c1_16, %c0_17] : memref<1x16x4xf32, #tpu.memory_space<vmem>>, vector<1x14x4xf32>
    %c0_18 = arith.constant 0 : index
    %c2 = arith.constant 2 : index
    %c0_19 = arith.constant 0 : index
    %14 = vector.load %arg1[%c0_18, %c2, %c0_19] : memref<1x16x4xf32, #tpu.memory_space<vmem>>, vector<1x14x4xf32>
    %15 = tpu.concatenate %12, %13, %14 in 2 : vector<1x14x4xf32>, vector<1x14x4xf32>, vector<1x14x4xf32> -> vector<1x14x12xf32>
    %c0_20 = arith.constant 0 : index
    %c0_21 = arith.constant 0 : index
    %16 = vector.load %arg3[%c0_20, %c0_21] : memref<12x8xf32, #tpu.memory_space<vmem>>, vector<12x8xf32>
    %cst_22 = arith.constant dense<0.000000e+00> : vector<1x14x8xf32>
    %17 = tpu.matmul %15, %16, %cst_22 {dimension_numbers = #tpu.dot_dimension_numbers<[2], [0], [0, 1], [1], [0, 0, 0, 1, 1, 1], [], []>} : vector<1x14x12xf32>, vector<12x8xf32>, vector<1x14x8xf32> -> vector<1x14x8xf32>
    %c0_23 = arith.constant 0 : index
    %c0_24 = arith.constant 0 : index
    %18 = vector.load %arg6[%c0_23, %c0_24] : memref<1x8xf32, #tpu.memory_space<vmem>>, vector<1x8xf32>
    %19 = vector.shape_cast %18 : vector<1x8xf32> to vector<1x1x8xf32>
    %20 = vector.broadcast %19 : vector<1x1x8xf32> to vector<1x14x8xf32>
    %21 = arith.addf %17, %20 : vector<1x14x8xf32>
    %cst_25 = arith.constant 0.000000e+00 : f32
    %22 = vector.broadcast %cst_25 : f32 to vector<1x14x8xf32>
    %23 = arith.maximumf %21, %22 : vector<1x14x8xf32>
    %c0_26 = arith.constant 0 : index
    %c0_27 = arith.constant 0 : index
    %c0_28 = arith.constant 0 : index
    %24 = vector.load %arg9[%c0_26, %c0_27, %c0_28] : memref<1x14x8xf32, #tpu.memory_space<vmem>>, vector<1x14x8xf32>
    tpu.vector_store %arg9[%c0_26, %c0_27, %c0_28], %23 {strides = array<i32>} : memref<1x14x8xf32, #tpu.memory_space<vmem>>, vector<1x14x8xf32>,
    %c0_29 = arith.constant 0 : index
    %c0_30 = arith.constant 0 : index
    %c0_31 = arith.constant 0 : index
    %25 = vector.load %arg1[%c0_29, %c0_30, %c0_31] : memref<1x16x4xf32, #tpu.memory_space<vmem>>, vector<1x13x4xf32>
    %c0_32 = arith.constant 0 : index
    %c1_33 = arith.constant 1 : index
    %c0_34 = arith.constant 0 : index
    %26 = vector.load %arg1[%c0_32, %c1_33, %c0_34] : memref<1x16x4xf32, #tpu.memory_space<vmem>>, vector<1x13x4xf32>
    %c0_35 = arith.constant 0 : index
    %c2_36 = arith.constant 2 : index
    %c0_37 = arith.constant 0 : index
    %27 = vector.load %arg1[%c0_35, %c2_36, %c0_37] : memref<1x16x4xf32, #tpu.memory_space<vmem>>, vector<1x13x4xf32>
    %c0_38 = arith.constant 0 : index
    %c3 = arith.constant 3 : index
    %c0_39 = arith.constant 0 : index
    %28 = vector.load %arg1[%c0_38, %c3, %c0_39] : memref<1x16x4xf32, #tpu.memory_space<vmem>>, vector<1x13x4xf32>
    %29 = tpu.concatenate %25, %26, %27, %28 in 2 : vector<1x13x4xf32>, vector<1x13x4xf32>, vector<1x13x4xf32>, vector<1x13x4xf32> -> vector<1x13x16xf32>
    %c0_40 = arith.constant 0 : index
    %c0_41 = arith.constant 0 : index
    %30 = vector.load %arg4[%c0_40, %c0_41] : memref<16x8xf32, #tpu.memory_space<vmem>>, vector<16x8xf32>
    %cst_42 = arith.constant dense<0.000000e+00> : vector<1x13x8xf32>
    %31 = tpu.matmul %29, %30, %cst_42 {dimension_numbers = #tpu.dot_dimension_numbers<[2], [0], [0, 1], [1], [0, 0, 0, 1, 1, 1], [], []>} : vector<1x13x16xf32>, vector<16x8xf32>, vector<1x13x8xf32> -> vector<1x13x8xf32>
    %c0_43 = arith.constant 0 : index
    %c0_44 = arith.constant 0 : index
    %32 = vector.load %arg7[%c0_43, %c0_44] : memref<1x8xf32, #tpu.memory_space<vmem>>, vector<1x8xf32>
    %33 = vector.shape_cast %32 : vector<1x8xf32> to vector<1x1x8xf32>
    %34 = vector.broadcast %33 : vector<1x1x8xf32> to vector<1x13x8xf32>
    %35 = arith.addf %31, %34 : vector<1x13x8xf32>
    %cst_45 = arith.constant 0.000000e+00 : f32
    %36 = vector.broadcast %cst_45 : f32 to vector<1x13x8xf32>
    %37 = arith.maximumf %35, %36 : vector<1x13x8xf32>
    %c0_46 = arith.constant 0 : index
    %c0_47 = arith.constant 0 : index
    %c0_48 = arith.constant 0 : index
    %38 = vector.load %arg10[%c0_46, %c0_47, %c0_48] : memref<1x13x8xf32, #tpu.memory_space<vmem>>, vector<1x13x8xf32>
    tpu.vector_store %arg10[%c0_46, %c0_47, %c0_48], %37 {strides = array<i32>} : memref<1x13x8xf32, #tpu.memory_space<vmem>>, vector<1x13x8xf32>,
    return
  }
  func.func @transform_0(%arg0: i32) -> (i32, i32, i32) {
    %c0_i32 = arith.constant 0 : i32
    %c0_i32_0 = arith.constant 0 : i32
    %c0_i32_1 = arith.constant 0 : i32
    return %arg0, %c0_i32, %c0_i32_0 : i32, i32, i32
  }
  func.func @transform_1(%arg0: i32) -> (i32, i32) {
    %c0_i32 = arith.constant 0 : i32
    %c0_i32_0 = arith.constant 0 : i32
    %c0_i32_1 = arith.constant 0 : i32
    return %c0_i32, %c0_i32_0 : i32, i32
  }
  func.func @transform_2(%arg0: i32) -> (i32, i32) {
    %c0_i32 = arith.constant 0 : i32
    %c0_i32_0 = arith.constant 0 : i32
    %c0_i32_1 = arith.constant 0 : i32
    return %c0_i32, %c0_i32_0 : i32, i32
  }
  func.func @transform_3(%arg0: i32) -> (i32, i32) {
    %c0_i32 = arith.constant 0 : i32
    %c0_i32_0 = arith.constant 0 : i32
    %c0_i32_1 = arith.constant 0 : i32
    return %c0_i32, %c0_i32_0 : i32, i32
  }
  func.func @transform_4(%arg0: i32) -> (i32, i32) {
    %c0_i32 = arith.constant 0 : i32
    %c0_i32_0 = arith.constant 0 : i32
    %c0_i32_1 = arith.constant 0 : i32
    return %c0_i32, %c0_i32_0 : i32, i32
  }
  func.func @transform_5(%arg0: i32) -> (i32, i32) {
    %c0_i32 = arith.constant 0 : i32
    %c0_i32_0 = arith.constant 0 : i32
    %c0_i32_1 = arith.constant 0 : i32
    return %c0_i32, %c0_i32_0 : i32, i32
  }
  func.func @transform_6(%arg0: i32) -> (i32, i32) {
    %c0_i32 = arith.constant 0 : i32
    %c0_i32_0 = arith.constant 0 : i32
    %c0_i32_1 = arith.constant 0 : i32
    return %c0_i32, %c0_i32_0 : i32, i32
  }
  func.func @transform_7(%arg0: i32) -> (i32, i32, i32) {
    %c0_i32 = arith.constant 0 : i32
    %c0_i32_0 = arith.constant 0 : i32
    %c0_i32_1 = arith.constant 0 : i32
    return %arg0, %c0_i32, %c0_i32_0 : i32, i32, i32
  }
  func.func @transform_8(%arg0: i32) -> (i32, i32, i32) {
    %c0_i32 = arith.constant 0 : i32
    %c0_i32_0 = arith.constant 0 : i32
    %c0_i32_1 = arith.constant 0 : i32
    return %arg0, %c0_i32, %c0_i32_0 : i32, i32, i32
  }
  func.func @transform_9(%arg0: i32) -> (i32, i32, i32) {
    %c0_i32 = arith.constant 0 : i32
    %c0_i32_0 = arith.constant 0 : i32
    %c0_i32_1 = arith.constant 0 : i32
    return %arg0, %c0_i32, %c0_i32_0 : i32, i32, i32
  }
}

</mosaic_0001>

<llo_original>
// kernel: tpu_custom_call.1
$region0: #{tpu_custom_call.1}
  #allocation0 [shape = 'u32[]', space=smem, size = 0x4, offset = 0x4, fixed_abs, tag = 'smem constant byte address 0x4 - core index']
  #allocation1 [shape = 'u32[144,128]{1,0:T(1,128)}', space=vmem, size = 0x12000, scoped, tag = 'internal scratch']
  %s0 = inlined_call_operand.vmem [shape: f32[2,16,4], index: 0, kind: input, shape index: {}]
  %s1 = inlined_call_operand.vmem [shape: f32[8,8], index: 1, kind: input, shape index: {}]
  %s2 = inlined_call_operand.vmem [shape: f32[12,8], index: 2, kind: input, shape index: {}]
  %s3 = inlined_call_operand.vmem [shape: f32[16,8], index: 3, kind: input, shape index: {}]
  %s4 = inlined_call_operand.vmem [shape: f32[1,8], index: 4, kind: input, shape index: {}]
  %s5 = inlined_call_operand.vmem [shape: f32[1,8], index: 5, kind: input, shape index: {}]
  %s6 = inlined_call_operand.vmem [shape: f32[1,8], index: 6, kind: input, shape index: {}]
  %s7 = inlined_call_operand.vmem [shape: f32[2,15,8], index: 7, kind: output, shape index: {0}]
  %s8 = inlined_call_operand.vmem [shape: f32[2,14,8], index: 8, kind: output, shape index: {1}]
  %s9 = inlined_call_operand.vmem [shape: f32[2,13,8], index: 9, kind: output, shape index: {2}]
  %10 = xla_tuple %s7, %s8, %s9
  %s11 = sld [smem:[#allocation0]]
  $region77: #{tpu_custom_call.1} parent=0
    _
  %s13 = ssub.s32 1, %s11
  %s14 = scalar_select 0, %s13, %s11
  loop: start=0, step=1, limit=4
  $region2: #{tpu_custom_call.1} parent=0 // loop_pre_header
    _
  $region3: #{tpu_custom_call.1} parent=0 // loop_header
    %s16 = sphi 0, %s20
    %p17 = scmp.ge.s32.totalorder %s16, 4
    %s26 = sphi 0, %s28
    %s29 = sphi 0, %s26
    %s30 = sphi 0, %s29
    %s46 = sphi 0, %s30
    %s50 = sphi 0, %s50
    %s52 = sphi 0, %s50
    %s53 = sphi 0, %s52
    %s67 = sphi 0, %s53
    %s71 = sphi 0, %s71
    %s73 = sphi 0, %s71
    %s74 = sphi 0, %s73
    %s88 = sphi 0, %s74
    %s92 = sphi 0, %s92
    %s94 = sphi 0, %s92
    %s95 = sphi 0, %s94
    %s109 = sphi 0, %s95
    %s113 = sphi 0, %s113
    %s115 = sphi 0, %s113
    %s116 = sphi 0, %s115
    %s130 = sphi 0, %s116
    %s134 = sphi 0, %s134
    %s136 = sphi 0, %s134
    %s137 = sphi 0, %s136
    %s151 = sphi 0, %s137
    %s155 = sphi 0, %s155
    %s157 = sphi 0, %s155
    %s158 = sphi 0, %s157
    %s172 = sphi 0, %s158
    %s178 = sphi 0, %s180
    %s181 = sphi 0, %s178
    %s182 = sphi 0, %s181
    %s198 = sphi 0, %s182
    %s204 = sphi 0, %s206
    %s207 = sphi 0, %s204
    %s208 = sphi 0, %s207
    %s224 = sphi 0, %s208
    %s230 = sphi 0, %s232
    %s233 = sphi 0, %s230
    %s234 = sphi 0, %s233
    %s250 = sphi 0, %s234
  $region4: #{tpu_custom_call.1} parent=0 // loop_header_branch
    %19 = sbr.rel (%p17) target = $region8
  $region5: #{tpu_custom_call.1} parent=0 // loop_body
    %s21 = ssub.s32 %s16, 1
    %s22 = ssub.s32 %s16, 2
    %s23 = sadd.s32 %s16, 1
    %s24 = ssub.s32 %s16, %s23
    %p25 = scmp.eq.s32.totalorder %s24, 0
    %s27 = sadd.s32 %s26, 1
    %s28 = scalar_select %p25, %s26, %s27
    %p31 = pneg %p25
    %p32 = scmp.eq.s32.totalorder %s16, 1
    %p33 = por %p31, %p32
    %p34 = scmp.ne.s32.totalorder %s26, %s29
    %p35 = scmp.eq.s32.totalorder %s16, 0
    %p36 = por %p34, %p35
    %p37 = scmp.ne.s32.totalorder %s26, %s29
    %p38 = scmp.eq.s32.totalorder %s21, 1
    %p39 = por %p37, %p38
    %p40 = scmp.ne.s32.totalorder %s29, %s30
    %p41 = scmp.eq.s32.totalorder %s21, 0
    %p42 = por %p40, %p41
    %p43 = scmp.ne.s32.totalorder %s29, %s30
    %p44 = scmp.eq.s32.totalorder %s22, 1
    %p45 = por %p43, %p44
    %p47 = scmp.ne.s32.totalorder %s30, %s46
    %p48 = scmp.eq.s32.totalorder %s22, 0
    %p49 = por %p47, %p48
    %s51 = sadd.s32 %s50, 1
    %p54 = scmp.eq.s32.totalorder %s16, 1
    %p55 = scmp.ne.s32.totalorder %s50, %s52
    %p56 = scmp.eq.s32.totalorder %s16, 0
    %p57 = por %p55, %p56
    %p58 = scmp.ne.s32.totalorder %s50, %s52
    %p59 = scmp.eq.s32.totalorder %s21, 1
    %p60 = por %p58, %p59
    %p61 = scmp.ne.s32.totalorder %s52, %s53
    %p62 = scmp.eq.s32.totalorder %s21, 0
    %p63 = por %p61, %p62
    %p64 = scmp.ne.s32.totalorder %s52, %s53
    %p65 = scmp.eq.s32.totalorder %s22, 1
    %p66 = por %p64, %p65
    %p68 = scmp.ne.s32.totalorder %s53, %s67
    %p69 = scmp.eq.s32.totalorder %s22, 0
    %p70 = por %p68, %p69
    %s72 = sadd.s32 %s71, 1
    %p75 = scmp.eq.s32.totalorder %s16, 1
    %p76 = scmp.ne.s32.totalorder %s71, %s73
    %p77 = scmp.eq.s32.totalorder %s16, 0
    %p78 = por %p76, %p77
    %p79 = scmp.ne.s32.totalorder %s71, %s73
    %p80 = scmp.eq.s32.totalorder %s21, 1
    %p81 = por %p79, %p80
    %p82 = scmp.ne.s32.totalorder %s73, %s74
    %p83 = scmp.eq.s32.totalorder %s21, 0
    %p84 = por %p82, %p83
    %p85 = scmp.ne.s32.totalorder %s73, %s74
    %p86 = scmp.eq.s32.totalorder %s22, 1
    %p87 = por %p85, %p86
    %p89 = scmp.ne.s32.totalorder %s74, %s88
    %p90 = scmp.eq.s32.totalorder %s22, 0
    %p91 = por %p89, %p90
    %s93 = sadd.s32 %s92, 1
    %p96 = scmp.eq.s32.totalorder %s16, 1
    %p97 = scmp.ne.s32.totalorder %s92, %s94
    %p98 = scmp.eq.s32.totalorder %s16, 0
    %p99 = por %p97, %p98
    %p100 = scmp.ne.s32.totalorder %s92, %s94
    %p101 = scmp.eq.s32.totalorder %s21, 1
    %p102 = por %p100, %p101
    %p103 = scmp.ne.s32.totalorder %s94, %s95
    %p104 = scmp.eq.s32.totalorder %s21, 0
    %p105 = por %p103, %p104
    %p106 = scmp.ne.s32.totalorder %s94, %s95
    %p107 = scmp.eq.s32.totalorder %s22, 1
    %p108 = por %p106, %p107
    %p110 = scmp.ne.s32.totalorder %s95, %s109
    %p111 = scmp.eq.s32.totalorder %s22, 0
    %p112 = por %p110, %p111
    %s114 = sadd.s32 %s113, 1
    %p117 = scmp.eq.s32.totalorder %s16, 1
    %p118 = scmp.ne.s32.totalorder %s113, %s115
    %p119 = scmp.eq.s32.totalorder %s16, 0
    %p120 = por %p118, %p119
    %p121 = scmp.ne.s32.totalorder %s113, %s115
    %p122 = scmp.eq.s32.totalorder %s21, 1
    %p123 = por %p121, %p122
    %p124 = scmp.ne.s32.totalorder %s115, %s116
    %p125 = scmp.eq.s32.totalorder %s21, 0
    %p126 = por %p124, %p125
    %p127 = scmp.ne.s32.totalorder %s115, %s116
    %p128 = scmp.eq.s32.totalorder %s22, 1
    %p129 = por %p127, %p128
    %p131 = scmp.ne.s32.totalorder %s116, %s130
    %p132 = scmp.eq.s32.totalorder %s22, 0
    %p133 = por %p131, %p132
    %s135 = sadd.s32 %s134, 1
    %p138 = scmp.eq.s32.totalorder %s16, 1
    %p139 = scmp.ne.s32.totalorder %s134, %s136
    %p140 = scmp.eq.s32.totalorder %s16, 0
    %p141 = por %p139, %p140
    %p142 = scmp.ne.s32.totalorder %s134, %s136
    %p143 = scmp.eq.s32.totalorder %s21, 1
    %p144 = por %p142, %p143
    %p145 = scmp.ne.s32.totalorder %s136, %s137
    %p146 = scmp.eq.s32.totalorder %s21, 0
    %p147 = por %p145, %p146
    %p148 = scmp.ne.s32.totalorder %s136, %s137
    %p149 = scmp.eq.s32.totalorder %s22, 1
    %p150 = por %p148, %p149
    %p152 = scmp.ne.s32.totalorder %s137, %s151
    %p153 = scmp.eq.s32.totalorder %s22, 0
    %p154 = por %p152, %p153
    %s156 = sadd.s32 %s155, 1
    %p159 = scmp.eq.s32.totalorder %s16, 1
    %p160 = scmp.ne.s32.totalorder %s155, %s157
    %p161 = scmp.eq.s32.totalorder %s16, 0
    %p162 = por %p160, %p161
    %p163 = scmp.ne.s32.totalorder %s155, %s157
    %p164 = scmp.eq.s32.totalorder %s21, 1
    %p165 = por %p163, %p164
    %p166 = scmp.ne.s32.totalorder %s157, %s158
    %p167 = scmp.eq.s32.totalorder %s21, 0
    %p168 = por %p166, %p167
    %p169 = scmp.ne.s32.totalorder %s157, %s158
    %p170 = scmp.eq.s32.totalorder %s22, 1
    %p171 = por %p169, %p170
    %p173 = scmp.ne.s32.totalorder %s158, %s172
    %p174 = scmp.eq.s32.totalorder %s22, 0
    %p175 = por %p173, %p174
    %s176 = ssub.s32 %s16, %s23
    %p177 = scmp.eq.s32.totalorder %s176, 0
    %s179 = sadd.s32 %s178, 1
    %s180 = scalar_select %p177, %s178, %s179
    %p183 = pneg %p177
    %p184 = scmp.eq.s32.totalorder %s16, 1
    %p185 = por %p183, %p184
    %p186 = scmp.ne.s32.totalorder %s178, %s181
    %p187 = scmp.eq.s32.totalorder %s16, 0
    %p188 = por %p186, %p187
    %p189 = scmp.ne.s32.totalorder %s178, %s181
    %p190 = scmp.eq.s32.totalorder %s21, 1
    %p191 = por %p189, %p190
    %p192 = scmp.ne.s32.totalorder %s181, %s182
    %p193 = scmp.eq.s32.totalorder %s21, 0
    %p194 = por %p192, %p193
    %p195 = scmp.ne.s32.totalorder %s181, %s182
    %p196 = scmp.eq.s32.totalorder %s22, 1
    %p197 = por %p195, %p196
    %p199 = scmp.ne.s32.totalorder %s182, %s198
    %p200 = scmp.eq.s32.totalorder %s22, 0
    %p201 = por %p199, %p200
    %s202 = ssub.s32 %s16, %s23
    %p203 = scmp.eq.s32.totalorder %s202, 0
    %s205 = sadd.s32 %s204, 1
    %s206 = scalar_select %p203, %s204, %s205
    %p209 = pneg %p203
    %p210 = scmp.eq.s32.totalorder %s16, 1
    %p211 = por %p209, %p210
    %p212 = scmp.ne.s32.totalorder %s204, %s207
    %p213 = scmp.eq.s32.totalorder %s16, 0
    %p214 = por %p212, %p213
    %p215 = scmp.ne.s32.totalorder %s204, %s207
    %p216 = scmp.eq.s32.totalorder %s21, 1
    %p217 = por %p215, %p216
    %p218 = scmp.ne.s32.totalorder %s207, %s208
    %p219 = scmp.eq.s32.totalorder %s21, 0
    %p220 = por %p218, %p219
    %p221 = scmp.ne.s32.totalorder %s207, %s208
    %p222 = scmp.eq.s32.totalorder %s22, 1
    %p223 = por %p221, %p222
    %p225 = scmp.ne.s32.totalorder %s208, %s224
    %p226 = scmp.eq.s32.totalorder %s22, 0
    %p227 = por %p225, %p226
    %s228 = ssub.s32 %s16, %s23
    %p229 = scmp.eq.s32.totalorder %s228, 0
    %s231 = sadd.s32 %s230, 1
    %s232 = scalar_select %p229, %s230, %s231
    %p235 = pneg %p229
    %p236 = scmp.eq.s32.totalorder %s16, 1
    %p237 = por %p235, %p236
    %p238 = scmp.ne.s32.totalorder %s230, %s233
    %p239 = scmp.eq.s32.totalorder %s16, 0
    %p240 = por %p238, %p239
    %p241 = scmp.ne.s32.totalorder %s230, %s233
    %p242 = scmp.eq.s32.totalorder %s21, 1
    %p243 = por %p241, %p242
    %p244 = scmp.ne.s32.totalorder %s233, %s234
    %p245 = scmp.eq.s32.totalorder %s21, 0
    %p246 = por %p244, %p245
    %p247 = scmp.ne.s32.totalorder %s233, %s234
    %p248 = scmp.eq.s32.totalorder %s22, 1
    %p249 = por %p247, %p248
    %p251 = scmp.ne.s32.totalorder %s234, %s250
    %p252 = scmp.eq.s32.totalorder %s22, 0
    %p253 = por %p251, %p252
    %p254 = scmp.le.s32.totalorder 1, %s16
    %p255 = scmp.lt.s32.totalorder %s16, 3
    %p256 = pnand %p254, %p255
    %p257 = pneg %p256
    // Predicated region
    $region9: #{tpu_custom_call.1} parent=5 // pred_check
      _
    $region10: #{tpu_custom_call.1} parent=5 // pred_check_branch
      %259 = sbr.rel (%p256) target = $region12
    $region11: #{tpu_custom_call.1} parent=5 // pred_region
      %s260 = ssub.s32 %s16, 1
      // Predicated region
      $region13: #{tpu_custom_call.1} parent=11 // pred_check
        %p261 = pneg %p63
      $region14: #{tpu_custom_call.1} parent=11 // pred_check_branch
        %263 = sbr.rel (%p261) target = $region16
      $region15: #{tpu_custom_call.1} parent=11 // pred_region
        _
      $region16: #{tpu_custom_call.1} parent=11 // pred_fallthru
        _
      // Predicated region
      $region17: #{tpu_custom_call.1} parent=11 // pred_check
        %p264 = pneg %p84
      $region18: #{tpu_custom_call.1} parent=11 // pred_check_branch
        %266 = sbr.rel (%p264) target = $region20
      $region19: #{tpu_custom_call.1} parent=11 // pred_region
        _
      $region20: #{tpu_custom_call.1} parent=11 // pred_fallthru
        _
      // Predicated region
      $region21: #{tpu_custom_call.1} parent=11 // pred_check
        %p267 = pneg %p105
      $region22: #{tpu_custom_call.1} parent=11 // pred_check_branch
        %269 = sbr.rel (%p267) target = $region24
      $region23: #{tpu_custom_call.1} parent=11 // pred_region
        _
      $region24: #{tpu_custom_call.1} parent=11 // pred_fallthru
        _
      // Predicated region
      $region25: #{tpu_custom_call.1} parent=11 // pred_check
        %p270 = pneg %p126
      $region26: #{tpu_custom_call.1} parent=11 // pred_check_branch
        %272 = sbr.rel (%p270) target = $region28
      $region27: #{tpu_custom_call.1} parent=11 // pred_region
        _
      $region28: #{tpu_custom_call.1} parent=11 // pred_fallthru
        _
      // Predicated region
      $region29: #{tpu_custom_call.1} parent=11 // pred_check
        %p273 = pneg %p147
      $region30: #{tpu_custom_call.1} parent=11 // pred_check_branch
        %275 = sbr.rel (%p273) target = $region32
      $region31: #{tpu_custom_call.1} parent=11 // pred_region
        _
      $region32: #{tpu_custom_call.1} parent=11 // pred_fallthru
        _
      // Predicated region
      $region33: #{tpu_custom_call.1} parent=11 // pred_check
        %p276 = pneg %p168
      $region34: #{tpu_custom_call.1} parent=11 // pred_check_branch
        %278 = sbr.rel (%p276) target = $region36
      $region35: #{tpu_custom_call.1} parent=11 // pred_region
        _
      $region36: #{tpu_custom_call.1} parent=11 // pred_fallthru
        _
    $region12: #{tpu_custom_call.1} parent=5 // pred_fallthru
      _
    %p279 = scmp.lt.s32.totalorder %s16, 2
    // Predicated region
    $region37: #{tpu_custom_call.1} parent=5 // pred_check
      %p280 = pneg %p279
    $region38: #{tpu_custom_call.1} parent=5 // pred_check_branch
      %282 = sbr.rel (%p280) target = $region40
    $region39: #{tpu_custom_call.1} parent=5 // pred_region
      // Predicated region
      $region41: #{tpu_custom_call.1} parent=39 // pred_check
        %p283 = pneg %p36
      $region42: #{tpu_custom_call.1} parent=39 // pred_check_branch
        %285 = sbr.rel (%p283) target = $region44
      $region43: #{tpu_custom_call.1} parent=39 // pred_region
        %p286 = scmp.lt.s32.totalorder %s16, 1
        %s287 = scalar_select %p286, %s16, 1
        %s288 = smul.addr %s287, 2
        %s289 = smul.addr %s288, 8
        %s290 = scalar_lea.vmem %s0, %s289
      $region44: #{tpu_custom_call.1} parent=39 // pred_fallthru
        _
    $region40: #{tpu_custom_call.1} parent=5 // pred_fallthru
      _
    %p291 = scmp.le.s32.totalorder 1, %s16
    %p292 = scmp.lt.s32.totalorder %s16, 3
    %p293 = pnand %p291, %p292
    %p294 = pneg %p293
    // Predicated region
    $region45: #{tpu_custom_call.1} parent=5 // pred_check
      _
    $region46: #{tpu_custom_call.1} parent=5 // pred_check_branch
      %296 = sbr.rel (%p293) target = $region48
    $region47: #{tpu_custom_call.1} parent=5 // pred_region
      %s297 = ssub.s32 %s16, 1
      %p298 = scmp.lt.s32.totalorder %s21, 1
      %s299 = scalar_select %p298, %s21, 1
      %s300 = smul.addr %s299, 2
      %s301 = smul.addr %s300, 8
      %s302 = scalar_lea.vmem %s0, %s301
      %p303 = pneg %p42
      %p304 = pneg %p39
      %p305 = pneg %p63
      %p306 = pneg %p60
      %p307 = pneg %p84
      %p308 = pneg %p81
      %p309 = pneg %p105
      %p310 = pneg %p102
      %p311 = pneg %p126
      %p312 = pneg %p123
      %p313 = pneg %p147
      %p314 = pneg %p144
      %p315 = pneg %p168
      %p316 = pneg %p165
      %p317 = pneg %p194
      %p318 = pneg %p191
      %p319 = scmp.lt.s32.totalorder %s21, 1
      %s320 = scalar_select %p319, %s21, 1
      %s321 = smul.addr %s320, 2
      %s322 = smul.addr %s321, 8
      %s323 = scalar_lea.vmem %s7, %s322
      %p324 = pneg %p220
      %p325 = pneg %p217
      %p326 = scmp.lt.s32.totalorder %s21, 1
      %s327 = scalar_select %p326, %s21, 1
      %s328 = smul.addr %s327, 2
      %s329 = smul.addr %s328, 8
      %s330 = scalar_lea.vmem %s8, %s329
      %p331 = pneg %p246
      %p332 = pneg %p243
      %p333 = scmp.lt.s32.totalorder %s21, 1
      %s334 = scalar_select %p333, %s21, 1
      %s335 = smul.addr %s334, 2
      %s336 = smul.addr %s335, 8
      %s337 = scalar_lea.vmem %s9, %s336
      %p338 = scmp.lt.s32.totalorder %s21, 1
      %s339 = scalar_select %p338, %s21, 1
      %s340 = smul.addr %s339, 2
      %s341 = smul.addr %s340, 8
      %s342 = scalar_lea.vmem %s0, %s341
      %p343 = scmp.lt.s32.totalorder %s21, 1
      %s344 = scalar_select %p343, %s21, 1
      %s345 = smul.addr %s344, 2
      %s346 = smul.addr %s345, 8
      %s347 = scalar_lea.vmem %s7, %s346
      %p348 = scmp.lt.s32.totalorder %s21, 1
      %s349 = scalar_select %p348, %s21, 1
      %s350 = smul.addr %s349, 2
      %s351 = smul.addr %s350, 8
      %s352 = scalar_lea.vmem %s8, %s351
      %p353 = scmp.lt.s32.totalorder %s21, 1
      %s354 = scalar_select %p353, %s21, 1
      %s355 = smul.addr %s354, 2
      %s356 = smul.addr %s355, 8
      %s357 = scalar_lea.vmem %s9, %s356
      %v358 = vld [vmem:[%s342] sm:$0xff]
      %v359 = vld [vmem:[%s342 + $0x8] sm:$0x7f]
      %v360 = vld [vmem:[%s342 + $0x1] sm:$0xff]
      %v361 = vld [vmem:[%s342 + $0x9] sm:$0x7f]
      %364 = vrot.lane.b32.xlu0 %v360, 4
      %v365 = vpop.permute.xlu0 %364
      %366 = vrot.lane.b32.xlu0 %v361, 4
      %v367 = vpop.permute.xlu0 %366
      %vm370 = vcmask 31744
      %v371 = vsel %vm370, %v358, %v365
      %v372 = vsel %vm370, %v359, %v367
      %v373 = vld [vmem:[%s1] sm:$0xff]
      %v374 = vld [vmem:[%s4] sm:$0x1]
      %v376 = vlaneseq
      %v377 = vshrl.u32 %v376, 7
      %v378 = vsub.s32 0, %v377
      %v379 = vrot.slane %v374, %v378
      %vm381 = vcmask 64512
      %v383 = vsel %vm381, %v371, 0
      %v386 = vsel %vm381, %v372, 0
      %388 = vmatprep.subr.mxu0 0.0
      %389 = vmatpush1.msra.mxu0 %v373
      %390 = vmatprep.subr.mxu0 0.0
      %391 = vmatpush1.msra.mxu0 0.0
      %392 = vmatprep.subr.mxu0 0.0
      %393 = vmatpush1.msra.mxu0 0.0
      %394 = vmatprep.subr.mxu0 0.0
      %395 = vmatpush1.msra.mxu0 0.0
      %396 = vmatprep.subr.mxu0 0.0
      %397 = vmatpush1.msra.mxu0 0.0
      %398 = vmatprep.subr.mxu0 0.0
      %399 = vmatpush1.msra.mxu0 0.0
      %400 = vmatprep.subr.mxu0 0.0
      %401 = vmatpush1.msra.mxu0 0.0
      %402 = vmatprep.subr.mxu0 0.0
      %403 = vmatpush1.msra.mxu0 0.0
      %404 = vmatprep.subr.mxu0 0.0
      %405 = vmatpush1.msra.mxu0 0.0
      %406 = vmatprep.subr.mxu0 0.0
      %407 = vmatpush1.msra.mxu0 0.0
      %408 = vmatprep.subr.mxu0 0.0
      %409 = vmatpush1.msra.mxu0 0.0
      %410 = vmatprep.subr.mxu0 0.0
      %411 = vmatpush1.msra.mxu0 0.0
      %412 = vmatprep.subr.mxu0 0.0
      %413 = vmatpush1.msra.mxu0 0.0
      %414 = vmatprep.subr.mxu0 0.0
      %415 = vmatpush1.msra.mxu0 0.0
      %416 = vmatprep.subr.mxu0 0.0
      %417 = vmatpush1.msra.mxu0 0.0
      %418 = vmatprep.subr.mxu0 0.0
      %419 = vmatpush1.msra.mxu0 0.0
      %420 = vmatprep.subr.mxu0 0.0
      %421 = vmatpush1.msra.mxu0 0.0
      %422 = vmatprep.subr.mxu0 0.0
      %423 = vmatpush1.msra.mxu0 0.0
      %424 = vmatprep.subr.mxu0 0.0
      %425 = vmatpush1.msra.mxu0 0.0
      %426 = vmatprep.subr.mxu0 0.0
      %427 = vmatpush1.msra.mxu0 0.0
      %428 = vmatprep.subr.mxu0 0.0
      %429 = vmatpush1.msra.mxu0 0.0
      %430 = vmatprep.subr.mxu0 0.0
      %431 = vmatpush1.msra.mxu0 0.0
      %432 = vmatprep.subr.mxu0 0.0
      %433 = vmatpush1.msra.mxu0 0.0
      %434 = vmatprep.subr.mxu0 0.0
      %435 = vmatpush1.msra.mxu0 0.0
      %436 = vmatprep.subr.mxu0 0.0
      %437 = vmatpush1.msra.mxu0 0.0
      %438 = vmatprep.subr.mxu0 0.0
      %439 = vmatpush1.msra.mxu0 0.0
      %440 = vmatprep.subr.mxu0 0.0
      %441 = vmatpush1.msra.mxu0 0.0
      %442 = vmatprep.subr.mxu0 0.0
      %443 = vmatpush1.msra.mxu0 0.0
      %444 = vmatprep.subr.mxu0 0.0
      %445 = vmatpush1.msra.mxu0 0.0
      %446 = vmatprep.subr.mxu0 0.0
      %447 = vmatpush1.msra.mxu0 0.0
      %448 = vmatprep.subr.mxu0 0.0
      %449 = vmatpush1.msra.mxu0 0.0
      %450 = vmatprep.subr.mxu0 0.0
      %451 = vmatpush1.msra.mxu0 0.0
      %452 = vmatprep.mubr.f32.mxu0 0.0
      %453 = vmatmul.mubr.f32.gmra.mrb[0].mxu0 %v383
      %v454 = vpop.f32.mrb[0].mxu0
      %v455 = vadd.f32 %v379, %v454
      %v456 = vpop.f32.mrb[0].mxu0
      %457 = vmatprep.mubr.f32.mxu0 0.0
      %458 = vmatmul.mubr.f32.gmra.mrb[0].mxu0 %v386
      %v459 = vpop.f32.mrb[0].mxu0
      %v460 = vadd.f32 %v379, %v459
      %v461 = vpop.f32.mrb[0].mxu0
      %462 = vdwg.mxu0
      %v463 = vmax.f32 %v455, 0.0
      %v464 = vmax.f32 %v460, 0.0
      %465 = vst.msk [vmem:[%s347] sm:$0xff] %vm381, %v463
      %vm466 = vcmask 63488
      %467 = vst.msk [vmem:[%s347 + $0x8] sm:$0x7f] %vm466, %v464
      %v468 = vld [vmem:[%s342] sm:$0xff]
      %v469 = vld [vmem:[%s342 + $0x8] sm:$0x3f]
      %v470 = vld [vmem:[%s342 + $0x1] sm:$0xff]
      %v471 = vld [vmem:[%s342 + $0x9] sm:$0x3f]
      %v472 = vld [vmem:[%s342 + $0x2] sm:$0xff]
      %v473 = vld [vmem:[%s342 + $0xa] sm:$0x3f]
      %476 = vrot.lane.b32.xlu0 %v470, 4
      %v477 = vpop.permute.xlu0 %476
      %478 = vrot.lane.b32.xlu0 %v471, 4
      %v479 = vpop.permute.xlu0 %478
      %484 = vrot.lane.b32.xlu0 %v472, 8
      %v485 = vpop.permute.xlu0 %484
      %486 = vrot.lane.b32.xlu0 %v473, 8
      %v487 = vpop.permute.xlu0 %486
      %v490 = vsel %vm370, %v468, %v477
      %v491 = vsel %vm370, %v469, %v479
      %v492 = vsel %vm381, %v490, %v485
      %v493 = vsel %vm381, %v491, %v487
      %v494 = vld [vmem:[%s2] sm:$0xff]
      %v495 = vld [vmem:[%s2 + $0x8] sm:$0xf]
      %v496 = vld [vmem:[%s5] sm:$0x1]
      %v498 = vlaneseq
      %v499 = vshrl.u32 %v498, 7
      %v500 = vsub.s32 0, %v499
      %v501 = vrot.slane %v496, %v500
      %vm503 = vcmask 97280
      %v505 = vsel %vm503, %v492, 0
      %v508 = vsel %vm503, %v493, 0
      %vm510 = vcmask 1043456
      %v512 = vsel %vm510, %v495, 0
      %514 = vmatprep.subr.mxu0 0.0
      %515 = vmatpush1.msra.mxu0 %v494
      %516 = vmatprep.subr.mxu0 0.0
      %517 = vmatpush1.msra.mxu0 %v512
      %518 = vmatprep.subr.mxu0 0.0
      %519 = vmatpush1.msra.mxu0 0.0
      %520 = vmatprep.subr.mxu0 0.0
      %521 = vmatpush1.msra.mxu0 0.0
      %522 = vmatprep.subr.mxu0 0.0
      %523 = vmatpush1.msra.mxu0 0.0
      %524 = vmatprep.subr.mxu0 0.0
      %525 = vmatpush1.msra.mxu0 0.0
      %526 = vmatprep.subr.mxu0 0.0
      %527 = vmatpush1.msra.mxu0 0.0
      %528 = vmatprep.subr.mxu0 0.0
      %529 = vmatpush1.msra.mxu0 0.0
      %530 = vmatprep.subr.mxu0 0.0
      %531 = vmatpush1.msra.mxu0 0.0
      %532 = vmatprep.subr.mxu0 0.0
      %533 = vmatpush1.msra.mxu0 0.0
      %534 = vmatprep.subr.mxu0 0.0
      %535 = vmatpush1.msra.mxu0 0.0
      %536 = vmatprep.subr.mxu0 0.0
      %537 = vmatpush1.msra.mxu0 0.0
      %538 = vmatprep.subr.mxu0 0.0
      %539 = vmatpush1.msra.mxu0 0.0
      %540 = vmatprep.subr.mxu0 0.0
      %541 = vmatpush1.msra.mxu0 0.0
      %542 = vmatprep.subr.mxu0 0.0
      %543 = vmatpush1.msra.mxu0 0.0
      %544 = vmatprep.subr.mxu0 0.0
      %545 = vmatpush1.msra.mxu0 0.0
      %546 = vmatprep.subr.mxu0 0.0
      %547 = vmatpush1.msra.mxu0 0.0
      %548 = vmatprep.subr.mxu0 0.0
      %549 = vmatpush1.msra.mxu0 0.0
      %550 = vmatprep.subr.mxu0 0.0
      %551 = vmatpush1.msra.mxu0 0.0
      %552 = vmatprep.subr.mxu0 0.0
      %553 = vmatpush1.msra.mxu0 0.0
      %554 = vmatprep.subr.mxu0 0.0
      %555 = vmatpush1.msra.mxu0 0.0
      %556 = vmatprep.subr.mxu0 0.0
      %557 = vmatpush1.msra.mxu0 0.0
      %558 = vmatprep.subr.mxu0 0.0
      %559 = vmatpush1.msra.mxu0 0.0
      %560 = vmatprep.subr.mxu0 0.0
      %561 = vmatpush1.msra.mxu0 0.0
      %562 = vmatprep.subr.mxu0 0.0
      %563 = vmatpush1.msra.mxu0 0.0
      %564 = vmatprep.subr.mxu0 0.0
      %565 = vmatpush1.msra.mxu0 0.0
      %566 = vmatprep.subr.mxu0 0.0
      %567 = vmatpush1.msra.mxu0 0.0
      %568 = vmatprep.subr.mxu0 0.0
      %569 = vmatpush1.msra.mxu0 0.0
      %570 = vmatprep.subr.mxu0 0.0
      %571 = vmatpush1.msra.mxu0 0.0
      %572 = vmatprep.subr.mxu0 0.0
      %573 = vmatpush1.msra.mxu0 0.0
      %574 = vmatprep.subr.mxu0 0.0
      %575 = vmatpush1.msra.mxu0 0.0
      %576 = vmatprep.subr.mxu0 0.0
      %577 = vmatpush1.msra.mxu0 0.0
      %578 = vmatprep.mubr.f32.mxu0 0.0
      %579 = vmatmul.mubr.f32.gmra.mrb[0].mxu0 %v505
      %v580 = vpop.f32.mrb[0].mxu0
      %v581 = vadd.f32 %v501, %v580
      %v582 = vpop.f32.mrb[0].mxu0
      %583 = vmatprep.mubr.f32.mxu0 0.0
      %584 = vmatmul.mubr.f32.gmra.mrb[0].mxu0 %v508
      %v585 = vpop.f32.mrb[0].mxu0
      %v586 = vadd.f32 %v501, %v585
      %v587 = vpop.f32.mrb[0].mxu0
      %588 = vdwg.mxu0
      %v589 = vmax.f32 %v581, 0.0
      %v590 = vmax.f32 %v586, 0.0
      %591 = vst.msk [vmem:[%s352] sm:$0xff] %vm381, %v589
      %vm592 = vcmask 62464
      %593 = vst.msk [vmem:[%s352 + $0x8] sm:$0x3f] %vm592, %v590
      %v594 = vld [vmem:[%s342] sm:$0xff]
      %v595 = vld [vmem:[%s342 + $0x8] sm:$0x1f]
      %v596 = vld [vmem:[%s342 + $0x1] sm:$0xff]
      %v597 = vld [vmem:[%s342 + $0x9] sm:$0x1f]
      %v598 = vld [vmem:[%s342 + $0x2] sm:$0xff]
      %v599 = vld [vmem:[%s342 + $0xa] sm:$0x1f]
      %v600 = vld [vmem:[%s342 + $0x3] sm:$0xff]
      %v601 = vld [vmem:[%s342 + $0xb] sm:$0x1f]
      %604 = vrot.lane.b32.xlu0 %v596, 4
      %v605 = vpop.permute.xlu0 %604
      %606 = vrot.lane.b32.xlu0 %v597, 4
      %v607 = vpop.permute.xlu0 %606
      %612 = vrot.lane.b32.xlu0 %v598, 8
      %v613 = vpop.permute.xlu0 %612
      %614 = vrot.lane.b32.xlu0 %v599, 8
      %v615 = vpop.permute.xlu0 %614
      %620 = vrot.lane.b32.xlu0 %v600, 12
      %v621 = vpop.permute.xlu0 %620
      %622 = vrot.lane.b32.xlu0 %v601, 12
      %v623 = vpop.permute.xlu0 %622
      %v626 = vsel %vm370, %v594, %v605
      %v627 = vsel %vm370, %v595, %v607
      %v628 = vsel %vm381, %v626, %v613
      %v629 = vsel %vm381, %v627, %v615
      %v630 = vsel %vm503, %v628, %v621
      %v631 = vsel %vm503, %v629, %v623
      %v632 = vld [vmem:[%s3] sm:$0xff]
      %v633 = vld [vmem:[%s3 + $0x8] sm:$0xff]
      %v634 = vld [vmem:[%s6] sm:$0x1]
      %v636 = vlaneseq
      %v637 = vshrl.u32 %v636, 7
      %v638 = vsub.s32 0, %v637
      %v639 = vrot.slane %v634, %v638
      %vm641 = vcmask 130048
      %v643 = vsel %vm641, %v630, 0
      %v646 = vsel %vm641, %v631, 0
      %648 = vmatprep.subr.mxu0 0.0
      %649 = vmatpush1.msra.mxu0 %v632
      %650 = vmatprep.subr.mxu0 0.0
      %651 = vmatpush1.msra.mxu0 %v633
      %652 = vmatprep.subr.mxu0 0.0
      %653 = vmatpush1.msra.mxu0 0.0
      %654 = vmatprep.subr.mxu0 0.0
      %655 = vmatpush1.msra.mxu0 0.0
      %656 = vmatprep.subr.mxu0 0.0
      %657 = vmatpush1.msra.mxu0 0.0
      %658 = vmatprep.subr.mxu0 0.0
      %659 = vmatpush1.msra.mxu0 0.0
      %660 = vmatprep.subr.mxu0 0.0
      %661 = vmatpush1.msra.mxu0 0.0
      %662 = vmatprep.subr.mxu0 0.0
      %663 = vmatpush1.msra.mxu0 0.0
      %664 = vmatprep.subr.mxu0 0.0
      %665 = vmatpush1.msra.mxu0 0.0
      %666 = vmatprep.subr.mxu0 0.0
      %667 = vmatpush1.msra.mxu0 0.0
      %668 = vmatprep.subr.mxu0 0.0
      %669 = vmatpush1.msra.mxu0 0.0
      %670 = vmatprep.subr.mxu0 0.0
      %671 = vmatpush1.msra.mxu0 0.0
      %672 = vmatprep.subr.mxu0 0.0
      %673 = vmatpush1.msra.mxu0 0.0
      %674 = vmatprep.subr.mxu0 0.0
      %675 = vmatpush1.msra.mxu0 0.0
      %676 = vmatprep.subr.mxu0 0.0
      %677 = vmatpush1.msra.mxu0 0.0
      %678 = vmatprep.subr.mxu0 0.0
      %679 = vmatpush1.msra.mxu0 0.0
      %680 = vmatprep.subr.mxu0 0.0
      %681 = vmatpush1.msra.mxu0 0.0
      %682 = vmatprep.subr.mxu0 0.0
      %683 = vmatpush1.msra.mxu0 0.0
      %684 = vmatprep.subr.mxu0 0.0
      %685 = vmatpush1.msra.mxu0 0.0
      %686 = vmatprep.subr.mxu0 0.0
      %687 = vmatpush1.msra.mxu0 0.0
      %688 = vmatprep.subr.mxu0 0.0
      %689 = vmatpush1.msra.mxu0 0.0
      %690 = vmatprep.subr.mxu0 0.0
      %691 = vmatpush1.msra.mxu0 0.0
      %692 = vmatprep.subr.mxu0 0.0
      %693 = vmatpush1.msra.mxu0 0.0
      %694 = vmatprep.subr.mxu0 0.0
      %695 = vmatpush1.msra.mxu0 0.0
      %696 = vmatprep.subr.mxu0 0.0
      %697 = vmatpush1.msra.mxu0 0.0
      %698 = vmatprep.subr.mxu0 0.0
      %699 = vmatpush1.msra.mxu0 0.0
      %700 = vmatprep.subr.mxu0 0.0
      %701 = vmatpush1.msra.mxu0 0.0
      %702 = vmatprep.subr.mxu0 0.0
      %703 = vmatpush1.msra.mxu0 0.0
      %704 = vmatprep.subr.mxu0 0.0
      %705 = vmatpush1.msra.mxu0 0.0
      %706 = vmatprep.subr.mxu0 0.0
      %707 = vmatpush1.msra.mxu0 0.0
      %708 = vmatprep.subr.mxu0 0.0
      %709 = vmatpush1.msra.mxu0 0.0
      %710 = vmatprep.subr.mxu0 0.0
      %711 = vmatpush1.msra.mxu0 0.0
      %712 = vmatprep.mubr.f32.mxu0 0.0
      %713 = vmatmul.mubr.f32.gmra.mrb[0].mxu0 %v643
      %v714 = vpop.f32.mrb[0].mxu0
      %v715 = vadd.f32 %v639, %v714
      %v716 = vpop.f32.mrb[0].mxu0
      %717 = vmatprep.mubr.f32.mxu0 0.0
      %718 = vmatmul.mubr.f32.gmra.mrb[0].mxu0 %v646
      %v719 = vpop.f32.mrb[0].mxu0
      %v720 = vadd.f32 %v639, %v719
      %v721 = vpop.f32.mrb[0].mxu0
      %722 = vdwg.mxu0
      %v723 = vmax.f32 %v715, 0.0
      %v724 = vmax.f32 %v720, 0.0
      %725 = vst.msk [vmem:[%s357] sm:$0xff] %vm381, %v723
      %vm726 = vcmask 61440
      %727 = vst.msk [vmem:[%s357 + $0x8] sm:$0x1f] %vm726, %v724
      %p728 = scmp.lt.s32.totalorder %s21, 1
      %s729 = scalar_select %p728, %s21, 1
      %s730 = smul.addr %s729, 2
      %s731 = smul.addr %s730, 8
      %s732 = scalar_lea.vmem %s7, %s731
      %p733 = scmp.lt.s32.totalorder %s21, 1
      %s734 = scalar_select %p733, %s21, 1
      %s735 = smul.addr %s734, 2
      %s736 = smul.addr %s735, 8
      %s737 = scalar_lea.vmem %s8, %s736
      %p738 = scmp.lt.s32.totalorder %s21, 1
      %s739 = scalar_select %p738, %s21, 1
      %s740 = smul.addr %s739, 2
      %s741 = smul.addr %s740, 8
      %s742 = scalar_lea.vmem %s9, %s741
      // Predicated region
      $region49: #{tpu_custom_call.1} parent=47 // pred_check
        %p743 = pneg %p191
      $region50: #{tpu_custom_call.1} parent=47 // pred_check_branch
        %745 = sbr.rel (%p743) target = $region52
      $region51: #{tpu_custom_call.1} parent=47 // pred_region
        _
      $region52: #{tpu_custom_call.1} parent=47 // pred_fallthru
        _
      // Predicated region
      $region53: #{tpu_custom_call.1} parent=47 // pred_check
        %p746 = pneg %p217
      $region54: #{tpu_custom_call.1} parent=47 // pred_check_branch
        %748 = sbr.rel (%p746) target = $region56
      $region55: #{tpu_custom_call.1} parent=47 // pred_region
        _
      $region56: #{tpu_custom_call.1} parent=47 // pred_fallthru
        _
      // Predicated region
      $region57: #{tpu_custom_call.1} parent=47 // pred_check
        %p749 = pneg %p243
      $region58: #{tpu_custom_call.1} parent=47 // pred_check_branch
        %751 = sbr.rel (%p749) target = $region60
      $region59: #{tpu_custom_call.1} parent=47 // pred_region
        _
      $region60: #{tpu_custom_call.1} parent=47 // pred_fallthru
        _
    $region48: #{tpu_custom_call.1} parent=5 // pred_fallthru
      _
    %p752 = scmp.le.s32.totalorder 2, %s16
    // Predicated region
    $region61: #{tpu_custom_call.1} parent=5 // pred_check
      %p753 = pneg %p752
    $region62: #{tpu_custom_call.1} parent=5 // pred_check_branch
      %755 = sbr.rel (%p753) target = $region64
    $region63: #{tpu_custom_call.1} parent=5 // pred_region
      %s756 = ssub.s32 %s16, 2
      // Predicated region
      $region65: #{tpu_custom_call.1} parent=63 // pred_check
        %p757 = pneg %p197
      $region66: #{tpu_custom_call.1} parent=63 // pred_check_branch
        %759 = sbr.rel (%p757) target = $region68
      $region67: #{tpu_custom_call.1} parent=63 // pred_region
        %p760 = scmp.lt.s32.totalorder %s22, 1
        %s761 = scalar_select %p760, %s22, 1
        %s762 = smul.addr %s761, 2
        %s763 = smul.addr %s762, 8
        %s764 = scalar_lea.vmem %s7, %s763
      $region68: #{tpu_custom_call.1} parent=63 // pred_fallthru
        _
      // Predicated region
      $region69: #{tpu_custom_call.1} parent=63 // pred_check
        %p765 = pneg %p223
      $region70: #{tpu_custom_call.1} parent=63 // pred_check_branch
        %767 = sbr.rel (%p765) target = $region72
      $region71: #{tpu_custom_call.1} parent=63 // pred_region
        %p768 = scmp.lt.s32.totalorder %s22, 1
        %s769 = scalar_select %p768, %s22, 1
        %s770 = smul.addr %s769, 2
        %s771 = smul.addr %s770, 8
        %s772 = scalar_lea.vmem %s8, %s771
      $region72: #{tpu_custom_call.1} parent=63 // pred_fallthru
        _
      // Predicated region
      $region73: #{tpu_custom_call.1} parent=63 // pred_check
        %p773 = pneg %p249
      $region74: #{tpu_custom_call.1} parent=63 // pred_check_branch
        %775 = sbr.rel (%p773) target = $region76
      $region75: #{tpu_custom_call.1} parent=63 // pred_region
        %p776 = scmp.lt.s32.totalorder %s22, 1
        %s777 = scalar_select %p776, %s22, 1
        %s778 = smul.addr %s777, 2
        %s779 = smul.addr %s778, 8
        %s780 = scalar_lea.vmem %s9, %s779
      $region76: #{tpu_custom_call.1} parent=63 // pred_fallthru
        _
    $region64: #{tpu_custom_call.1} parent=5 // pred_fallthru
      _
  $region6: #{tpu_custom_call.1} parent=0 // loop_footer
    %s20 = sadd.s32 1, %s16
  $region7: #{tpu_custom_call.1} parent=0 // loop_footer_branch
    %15 = sbr.rel target = $region3
  $region8: #{tpu_custom_call.1} parent=0 // loop_exit
    _

// kernel: tpu_custom_call.1
$region0: #{tpu_custom_call.1}
  #allocation0 [shape = 'u32[]', space=smem, size = 0x4, offset = 0x4, fixed_abs, tag = 'smem constant byte address 0x4 - core index']
  #allocation1 [shape = 'u32[144,128]{1,0:T(1,128)}', space=vmem, size = 0x12000, scoped, tag = 'internal scratch']
  %s0 = inlined_call_operand.vmem [shape: f32[2,16,4], index: 0, kind: input, shape index: {}]
  %s1 = inlined_call_operand.vmem [shape: f32[8,8], index: 1, kind: input, shape index: {}]
  %s2 = inlined_call_operand.vmem [shape: f32[12,8], index: 2, kind: input, shape index: {}]
  %s3 = inlined_call_operand.vmem [shape: f32[16,8], index: 3, kind: input, shape index: {}]
  %s4 = inlined_call_operand.vmem [shape: f32[1,8], index: 4, kind: input, shape index: {}]
  %s5 = inlined_call_operand.vmem [shape: f32[1,8], index: 5, kind: input, shape index: {}]
  %s6 = inlined_call_operand.vmem [shape: f32[1,8], index: 6, kind: input, shape index: {}]
  %s7 = inlined_call_operand.vmem [shape: f32[2,15,8], index: 7, kind: output, shape index: {0}]
  %s8 = inlined_call_operand.vmem [shape: f32[2,14,8], index: 8, kind: output, shape index: {1}]
  %s9 = inlined_call_operand.vmem [shape: f32[2,13,8], index: 9, kind: output, shape index: {2}]
  %10 = xla_tuple %s7, %s8, %s9
  %s11 = sld [smem:[#allocation0]]
  $region77: #{tpu_custom_call.1} parent=0
    _
  %s13 = ssub.s32 1, %s11
  %s14 = scalar_select 0, %s13, %s11
  loop: start=0, step=1, limit=4
  $region2: #{tpu_custom_call.1} parent=0 // loop_pre_header
    _
  $region3: #{tpu_custom_call.1} parent=0 // loop_header
    %s16 = sphi 0, %s20
    %p17 = scmp.ge.s32.totalorder %s16, 4
    %s26 = sphi 0, %s28
    %s29 = sphi 0, %s26
    %s30 = sphi 0, %s29
    %s46 = sphi 0, %s30
    %s50 = sphi 0, %s50
    %s52 = sphi 0, %s50
    %s53 = sphi 0, %s52
    %s67 = sphi 0, %s53
    %s71 = sphi 0, %s71
    %s73 = sphi 0, %s71
    %s74 = sphi 0, %s73
    %s88 = sphi 0, %s74
    %s92 = sphi 0, %s92
    %s94 = sphi 0, %s92
    %s95 = sphi 0, %s94
    %s109 = sphi 0, %s95
    %s113 = sphi 0, %s113
    %s115 = sphi 0, %s113
    %s116 = sphi 0, %s115
    %s130 = sphi 0, %s116
    %s134 = sphi 0, %s134
    %s136 = sphi 0, %s134
    %s137 = sphi 0, %s136
    %s151 = sphi 0, %s137
    %s155 = sphi 0, %s155
    %s157 = sphi 0, %s155
    %s158 = sphi 0, %s157
    %s172 = sphi 0, %s158
    %s178 = sphi 0, %s180
    %s181 = sphi 0, %s178
    %s182 = sphi 0, %s181
    %s198 = sphi 0, %s182
    %s204 = sphi 0, %s206
    %s207 = sphi 0, %s204
    %s208 = sphi 0, %s207
    %s224 = sphi 0, %s208
    %s230 = sphi 0, %s232
    %s233 = sphi 0, %s230
    %s234 = sphi 0, %s233
    %s250 = sphi 0, %s234
  $region4: #{tpu_custom_call.1} parent=0 // loop_header_branch
    %19 = sbr.rel (%p17) target = $region8
  $region5: #{tpu_custom_call.1} parent=0 // loop_body
    %s21 = ssub.s32 %s16, 1
    %s22 = ssub.s32 %s16, 2
    %s23 = sadd.s32 %s16, 1
    %s24 = ssub.s32 %s16, %s23
    %p25 = scmp.eq.s32.totalorder %s24, 0
    %s27 = sadd.s32 %s26, 1
    %s28 = scalar_select %p25, %s26, %s27
    %p31 = pneg %p25
    %p32 = scmp.eq.s32.totalorder %s16, 1
    %p33 = por %p31, %p32
    %p34 = scmp.ne.s32.totalorder %s26, %s29
    %p35 = scmp.eq.s32.totalorder %s16, 0
    %p36 = por %p34, %p35
    %p37 = scmp.ne.s32.totalorder %s26, %s29
    %p38 = scmp.eq.s32.totalorder %s21, 1
    %p39 = por %p37, %p38
    %p40 = scmp.ne.s32.totalorder %s29, %s30
    %p41 = scmp.eq.s32.totalorder %s21, 0
    %p42 = por %p40, %p41
    %p43 = scmp.ne.s32.totalorder %s29, %s30
    %p44 = scmp.eq.s32.totalorder %s22, 1
    %p45 = por %p43, %p44
    %p47 = scmp.ne.s32.totalorder %s30, %s46
    %p48 = scmp.eq.s32.totalorder %s22, 0
    %p49 = por %p47, %p48
    %s51 = sadd.s32 %s50, 1
    %p54 = scmp.eq.s32.totalorder %s16, 1
    %p55 = scmp.ne.s32.totalorder %s50, %s52
    %p56 = scmp.eq.s32.totalorder %s16, 0
    %p57 = por %p55, %p56
    %p58 = scmp.ne.s32.totalorder %s50, %s52
    %p59 = scmp.eq.s32.totalorder %s21, 1
    %p60 = por %p58, %p59
    %p61 = scmp.ne.s32.totalorder %s52, %s53
    %p62 = scmp.eq.s32.totalorder %s21, 0
    %p63 = por %p61, %p62
    %p64 = scmp.ne.s32.totalorder %s52, %s53
    %p65 = scmp.eq.s32.totalorder %s22, 1
    %p66 = por %p64, %p65
    %p68 = scmp.ne.s32.totalorder %s53, %s67
    %p69 = scmp.eq.s32.totalorder %s22, 0
    %p70 = por %p68, %p69
    %s72 = sadd.s32 %s71, 1
    %p75 = scmp.eq.s32.totalorder %s16, 1
    %p76 = scmp.ne.s32.totalorder %s71, %s73
    %p77 = scmp.eq.s32.totalorder %s16, 0
    %p78 = por %p76, %p77
    %p79 = scmp.ne.s32.totalorder %s71, %s73
    %p80 = scmp.eq.s32.totalorder %s21, 1
    %p81 = por %p79, %p80
    %p82 = scmp.ne.s32.totalorder %s73, %s74
    %p83 = scmp.eq.s32.totalorder %s21, 0
    %p84 = por %p82, %p83
    %p85 = scmp.ne.s32.totalorder %s73, %s74
    %p86 = scmp.eq.s32.totalorder %s22, 1
    %p87 = por %p85, %p86
    %p89 = scmp.ne.s32.totalorder %s74, %s88
    %p90 = scmp.eq.s32.totalorder %s22, 0
    %p91 = por %p89, %p90
    %s93 = sadd.s32 %s92, 1
    %p96 = scmp.eq.s32.totalorder %s16, 1
    %p97 = scmp.ne.s32.totalorder %s92, %s94
    %p98 = scmp.eq.s32.totalorder %s16, 0
    %p99 = por %p97, %p98
    %p100 = scmp.ne.s32.totalorder %s92, %s94
    %p101 = scmp.eq.s32.totalorder %s21, 1
    %p102 = por %p100, %p101
    %p103 = scmp.ne.s32.totalorder %s94, %s95
    %p104 = scmp.eq.s32.totalorder %s21, 0
    %p105 = por %p103, %p104
    %p106 = scmp.ne.s32.totalorder %s94, %s95
    %p107 = scmp.eq.s32.totalorder %s22, 1
    %p108 = por %p106, %p107
    %p110 = scmp.ne.s32.totalorder %s95, %s109
    %p111 = scmp.eq.s32.totalorder %s22, 0
    %p112 = por %p110, %p111
    %s114 = sadd.s32 %s113, 1
    %p117 = scmp.eq.s32.totalorder %s16, 1
    %p118 = scmp.ne.s32.totalorder %s113, %s115
    %p119 = scmp.eq.s32.totalorder %s16, 0
    %p120 = por %p118, %p119
    %p121 = scmp.ne.s32.totalorder %s113, %s115
    %p122 = scmp.eq.s32.totalorder %s21, 1
    %p123 = por %p121, %p122
    %p124 = scmp.ne.s32.totalorder %s115, %s116
    %p125 = scmp.eq.s32.totalorder %s21, 0
    %p126 = por %p124, %p125
    %p127 = scmp.ne.s32.totalorder %s115, %s116
    %p128 = scmp.eq.s32.totalorder %s22, 1
    %p129 = por %p127, %p128
    %p131 = scmp.ne.s32.totalorder %s116, %s130
    %p132 = scmp.eq.s32.totalorder %s22, 0
    %p133 = por %p131, %p132
    %s135 = sadd.s32 %s134, 1
    %p138 = scmp.eq.s32.totalorder %s16, 1
    %p139 = scmp.ne.s32.totalorder %s134, %s136
    %p140 = scmp.eq.s32.totalorder %s16, 0
    %p141 = por %p139, %p140
    %p142 = scmp.ne.s32.totalorder %s134, %s136
    %p143 = scmp.eq.s32.totalorder %s21, 1
    %p144 = por %p142, %p143
    %p145 = scmp.ne.s32.totalorder %s136, %s137
    %p146 = scmp.eq.s32.totalorder %s21, 0
    %p147 = por %p145, %p146
    %p148 = scmp.ne.s32.totalorder %s136, %s137
    %p149 = scmp.eq.s32.totalorder %s22, 1
    %p150 = por %p148, %p149
    %p152 = scmp.ne.s32.totalorder %s137, %s151
    %p153 = scmp.eq.s32.totalorder %s22, 0
    %p154 = por %p152, %p153
    %s156 = sadd.s32 %s155, 1
    %p159 = scmp.eq.s32.totalorder %s16, 1
    %p160 = scmp.ne.s32.totalorder %s155, %s157
    %p161 = scmp.eq.s32.totalorder %s16, 0
    %p162 = por %p160, %p161
    %p163 = scmp.ne.s32.totalorder %s155, %s157
    %p164 = scmp.eq.s32.totalorder %s21, 1
    %p165 = por %p163, %p164
    %p166 = scmp.ne.s32.totalorder %s157, %s158
    %p167 = scmp.eq.s32.totalorder %s21, 0
    %p168 = por %p166, %p167
    %p169 = scmp.ne.s32.totalorder %s157, %s158
    %p170 = scmp.eq.s32.totalorder %s22, 1
    %p171 = por %p169, %p170
    %p173 = scmp.ne.s32.totalorder %s158, %s172
    %p174 = scmp.eq.s32.totalorder %s22, 0
    %p175 = por %p173, %p174
    %s176 = ssub.s32 %s16, %s23
    %p177 = scmp.eq.s32.totalorder %s176, 0
    %s179 = sadd.s32 %s178, 1
    %s180 = scalar_select %p177, %s178, %s179
    %p183 = pneg %p177
    %p184 = scmp.eq.s32.totalorder %s16, 1
    %p185 = por %p183, %p184
    %p186 = scmp.ne.s32.totalorder %s178, %s181
    %p187 = scmp.eq.s32.totalorder %s16, 0
    %p188 = por %p186, %p187
    %p189 = scmp.ne.s32.totalorder %s178, %s181
    %p190 = scmp.eq.s32.totalorder %s21, 1
    %p191 = por %p189, %p190
    %p192 = scmp.ne.s32.totalorder %s181, %s182
    %p193 = scmp.eq.s32.totalorder %s21, 0
    %p194 = por %p192, %p193
    %p195 = scmp.ne.s32.totalorder %s181, %s182
    %p196 = scmp.eq.s32.totalorder %s22, 1
    %p197 = por %p195, %p196
    %p199 = scmp.ne.s32.totalorder %s182, %s198
    %p200 = scmp.eq.s32.totalorder %s22, 0
    %p201 = por %p199, %p200
    %s202 = ssub.s32 %s16, %s23
    %p203 = scmp.eq.s32.totalorder %s202, 0
    %s205 = sadd.s32 %s204, 1
    %s206 = scalar_select %p203, %s204, %s205
    %p209 = pneg %p203
    %p210 = scmp.eq.s32.totalorder %s16, 1
    %p211 = por %p209, %p210
    %p212 = scmp.ne.s32.totalorder %s204, %s207
    %p213 = scmp.eq.s32.totalorder %s16, 0
    %p214 = por %p212, %p213
    %p215 = scmp.ne.s32.totalorder %s204, %s207
    %p216 = scmp.eq.s32.totalorder %s21, 1
    %p217 = por %p215, %p216
    %p218 = scmp.ne.s32.totalorder %s207, %s208
    %p219 = scmp.eq.s32.totalorder %s21, 0
    %p220 = por %p218, %p219
    %p221 = scmp.ne.s32.totalorder %s207, %s208
    %p222 = scmp.eq.s32.totalorder %s22, 1
    %p223 = por %p221, %p222
    %p225 = scmp.ne.s32.totalorder %s208, %s224
    %p226 = scmp.eq.s32.totalorder %s22, 0
    %p227 = por %p225, %p226
    %s228 = ssub.s32 %s16, %s23
    %p229 = scmp.eq.s32.totalorder %s228, 0
    %s231 = sadd.s32 %s230, 1
    %s232 = scalar_select %p229, %s230, %s231
    %p235 = pneg %p229
    %p236 = scmp.eq.s32.totalorder %s16, 1
    %p237 = por %p235, %p236
    %p238 = scmp.ne.s32.totalorder %s230, %s233
    %p239 = scmp.eq.s32.totalorder %s16, 0
    %p240 = por %p238, %p239
    %p241 = scmp.ne.s32.totalorder %s230, %s233
    %p242 = scmp.eq.s32.totalorder %s21, 1
    %p243 = por %p241, %p242
    %p244 = scmp.ne.s32.totalorder %s233, %s234
    %p245 = scmp.eq.s32.totalorder %s21, 0
    %p246 = por %p244, %p245
    %p247 = scmp.ne.s32.totalorder %s233, %s234
    %p248 = scmp.eq.s32.totalorder %s22, 1
    %p249 = por %p247, %p248
    %p251 = scmp.ne.s32.totalorder %s234, %s250
    %p252 = scmp.eq.s32.totalorder %s22, 0
    %p253 = por %p251, %p252
    %p254 = scmp.le.s32.totalorder 1, %s16
    %p255 = scmp.lt.s32.totalorder %s16, 3
    %p256 = pnand %p254, %p255
    %p257 = pneg %p256
    // Predicated region
    $region9: #{tpu_custom_call.1} parent=5 // pred_check
      _
    $region10: #{tpu_custom_call.1} parent=5 // pred_check_branch
      %259 = sbr.rel (%p256) target = $region12
    $region11: #{tpu_custom_call.1} parent=5 // pred_region
      %s260 = ssub.s32 %s16, 1
      // Predicated region
      $region13: #{tpu_custom_call.1} parent=11 // pred_check
        %p261 = pneg %p63
      $region14: #{tpu_custom_call.1} parent=11 // pred_check_branch
        %263 = sbr.rel (%p261) target = $region16
      $region15: #{tpu_custom_call.1} parent=11 // pred_region
        _
      $region16: #{tpu_custom_call.1} parent=11 // pred_fallthru
        _
      // Predicated region
      $region17: #{tpu_custom_call.1} parent=11 // pred_check
        %p264 = pneg %p84
      $region18: #{tpu_custom_call.1} parent=11 // pred_check_branch
        %266 = sbr.rel (%p264) target = $region20
      $region19: #{tpu_custom_call.1} parent=11 // pred_region
        _
      $region20: #{tpu_custom_call.1} parent=11 // pred_fallthru
        _
      // Predicated region
      $region21: #{tpu_custom_call.1} parent=11 // pred_check
        %p267 = pneg %p105
      $region22: #{tpu_custom_call.1} parent=11 // pred_check_branch
        %269 = sbr.rel (%p267) target = $region24
      $region23: #{tpu_custom_call.1} parent=11 // pred_region
        _
      $region24: #{tpu_custom_call.1} parent=11 // pred_fallthru
        _
      // Predicated region
      $region25: #{tpu_custom_call.1} parent=11 // pred_check
        %p270 = pneg %p126
      $region26: #{tpu_custom_call.1} parent=11 // pred_check_branch
        %272 = sbr.rel (%p270) target = $region28
      $region27: #{tpu_custom_call.1} parent=11 // pred_region
        _
      $region28: #{tpu_custom_call.1} parent=11 // pred_fallthru
        _
      // Predicated region
      $region29: #{tpu_custom_call.1} parent=11 // pred_check
        %p273 = pneg %p147
      $region30: #{tpu_custom_call.1} parent=11 // pred_check_branch
        %275 = sbr.rel (%p273) target = $region32
      $region31: #{tpu_custom_call.1} parent=11 // pred_region
        _
      $region32: #{tpu_custom_call.1} parent=11 // pred_fallthru
        _
      // Predicated region
      $region33: #{tpu_custom_call.1} parent=11 // pred_check
        %p276 = pneg %p168
      $region34: #{tpu_custom_call.1} parent=11 // pred_check_branch
        %278 = sbr.rel (%p276) target = $region36
      $region35: #{tpu_custom_call.1} parent=11 // pred_region
        _
      $region36: #{tpu_custom_call.1} parent=11 // pred_fallthru
        _
    $region12: #{tpu_custom_call.1} parent=5 // pred_fallthru
      _
    %p279 = scmp.lt.s32.totalorder %s16, 2
    // Predicated region
    $region37: #{tpu_custom_call.1} parent=5 // pred_check
      %p280 = pneg %p279
    $region38: #{tpu_custom_call.1} parent=5 // pred_check_branch
      %282 = sbr.rel (%p280) target = $region40
    $region39: #{tpu_custom_call.1} parent=5 // pred_region
      // Predicated region
      $region41: #{tpu_custom_call.1} parent=39 // pred_check
        %p283 = pneg %p36
      $region42: #{tpu_custom_call.1} parent=39 // pred_check_branch
        %285 = sbr.rel (%p283) target = $region44
      $region43: #{tpu_custom_call.1} parent=39 // pred_region
        %p286 = scmp.lt.s32.totalorder %s16, 1
        %s287 = scalar_select %p286, %s16, 1
        %s288 = smul.addr %s287, 2
        %s289 = smul.addr %s288, 8
        %s290 = scalar_lea.vmem %s0, %s289
      $region44: #{tpu_custom_call.1} parent=39 // pred_fallthru
        _
    $region40: #{tpu_custom_call.1} parent=5 // pred_fallthru
      _
    %p291 = scmp.le.s32.totalorder 1, %s16
    %p292 = scmp.lt.s32.totalorder %s16, 3
    %p293 = pnand %p291, %p292
    %p294 = pneg %p293
    // Predicated region
    $region45: #{tpu_custom_call.1} parent=5 // pred_check
      _
    $region46: #{tpu_custom_call.1} parent=5 // pred_check_branch
      %296 = sbr.rel (%p293) target = $region48
    $region47: #{tpu_custom_call.1} parent=5 // pred_region
      %s297 = ssub.s32 %s16, 1
      %p298 = scmp.lt.s32.totalorder %s21, 1
      %s299 = scalar_select %p298, %s21, 1
      %s300 = smul.addr %s299, 2
      %s301 = smul.addr %s300, 8
      %s302 = scalar_lea.vmem %s0, %s301
      %p303 = pneg %p42
      %p304 = pneg %p39
      %p305 = pneg %p63
      %p306 = pneg %p60
      %p307 = pneg %p84
      %p308 = pneg %p81
      %p309 = pneg %p105
      %p310 = pneg %p102
      %p311 = pneg %p126
      %p312 = pneg %p123
      %p313 = pneg %p147
      %p314 = pneg %p144
      %p315 = pneg %p168
      %p316 = pneg %p165
      %p317 = pneg %p194
      %p318 = pneg %p191
      %p319 = scmp.lt.s32.totalorder %s21, 1
      %s320 = scalar_select %p319, %s21, 1
      %s321 = smul.addr %s320, 2
      %s322 = smul.addr %s321, 8
      %s323 = scalar_lea.vmem %s7, %s322
      %p324 = pneg %p220
      %p325 = pneg %p217
      %p326 = scmp.lt.s32.totalorder %s21, 1
      %s327 = scalar_select %p326, %s21, 1
      %s328 = smul.addr %s327, 2
      %s329 = smul.addr %s328, 8
      %s330 = scalar_lea.vmem %s8, %s329
      %p331 = pneg %p246
      %p332 = pneg %p243
      %p333 = scmp.lt.s32.totalorder %s21, 1
      %s334 = scalar_select %p333, %s21, 1
      %s335 = smul.addr %s334, 2
      %s336 = smul.addr %s335, 8
      %s337 = scalar_lea.vmem %s9, %s336
      %p338 = scmp.lt.s32.totalorder %s21, 1
      %s339 = scalar_select %p338, %s21, 1
      %s340 = smul.addr %s339, 2
      %s341 = smul.addr %s340, 8
      %s342 = scalar_lea.vmem %s0, %s341
      %p343 = scmp.lt.s32.totalorder %s21, 1
      %s344 = scalar_select %p343, %s21, 1
      %s345 = smul.addr %s344, 2
      %s346 = smul.addr %s345, 8
      %s347 = scalar_lea.vmem %s7, %s346
      %p348 = scmp.lt.s32.totalorder %s21, 1
      %s349 = scalar_select %p348, %s21, 1
      %s350 = smul.addr %s349, 2
      %s351 = smul.addr %s350, 8
      %s352 = scalar_lea.vmem %s8, %s351
      %p353 = scmp.lt.s32.totalorder %s21, 1
      %s354 = scalar_select %p353, %s21, 1
      %s355 = smul.addr %s354, 2
      %s356 = smul.addr %s355, 8
      %s357 = scalar_lea.vmem %s9, %s356
      %v358 = vld [vmem:[%s342] sm:$0xff]
      %v359 = vld [vmem:[%s342 + $0x8] sm:$0x7f]
      %v360 = vld [vmem:[%s342 + $0x1] sm:$0xff]
      %v361 = vld [vmem:[%s342 + $0x9] sm:$0x7f]
      %364 = vrot.lane.b32.xlu0 %v360, 4
      %v365 = vpop.permute.xlu0 %364
      %366 = vrot.lane.b32.xlu0 %v361, 4
      %v367 = vpop.permute.xlu0 %366
      %vm370 = vcmask 31744
      %v371 = vsel %vm370, %v358, %v365
      %v372 = vsel %vm370, %v359, %v367
      %v373 = vld [vmem:[%s1] sm:$0xff]
      %v374 = vld [vmem:[%s4] sm:$0x1]
      %v376 = vlaneseq
      %v377 = vshrl.u32 %v376, 7
      %v378 = vsub.s32 0, %v377
      %v379 = vrot.slane %v374, %v378
      %vm381 = vcmask 64512
      %v383 = vsel %vm381, %v371, 0
      %v386 = vsel %vm381, %v372, 0
      %388 = vmatprep.subr.mxu0 0.0
      %389 = vmatpush1.msra.mxu0 %v373
      %390 = vmatprep.subr.mxu0 0.0
      %391 = vmatpush1.msra.mxu0 0.0
      %392 = vmatprep.subr.mxu0 0.0
      %393 = vmatpush1.msra.mxu0 0.0
      %394 = vmatprep.subr.mxu0 0.0
      %395 = vmatpush1.msra.mxu0 0.0
      %396 = vmatprep.subr.mxu0 0.0
      %397 = vmatpush1.msra.mxu0 0.0
      %398 = vmatprep.subr.mxu0 0.0
      %399 = vmatpush1.msra.mxu0 0.0
      %400 = vmatprep.subr.mxu0 0.0
      %401 = vmatpush1.msra.mxu0 0.0
      %402 = vmatprep.subr.mxu0 0.0
      %403 = vmatpush1.msra.mxu0 0.0
      %404 = vmatprep.subr.mxu0 0.0
      %405 = vmatpush1.msra.mxu0 0.0
      %406 = vmatprep.subr.mxu0 0.0
      %407 = vmatpush1.msra.mxu0 0.0
      %408 = vmatprep.subr.mxu0 0.0
      %409 = vmatpush1.msra.mxu0 0.0
      %410 = vmatprep.subr.mxu0 0.0
      %411 = vmatpush1.msra.mxu0 0.0
      %412 = vmatprep.subr.mxu0 0.0
      %413 = vmatpush1.msra.mxu0 0.0
      %414 = vmatprep.subr.mxu0 0.0
      %415 = vmatpush1.msra.mxu0 0.0
      %416 = vmatprep.subr.mxu0 0.0
      %417 = vmatpush1.msra.mxu0 0.0
      %418 = vmatprep.subr.mxu0 0.0
      %419 = vmatpush1.msra.mxu0 0.0
      %420 = vmatprep.subr.mxu0 0.0
      %421 = vmatpush1.msra.mxu0 0.0
      %422 = vmatprep.subr.mxu0 0.0
      %423 = vmatpush1.msra.mxu0 0.0
      %424 = vmatprep.subr.mxu0 0.0
      %425 = vmatpush1.msra.mxu0 0.0
      %426 = vmatprep.subr.mxu0 0.0
      %427 = vmatpush1.msra.mxu0 0.0
      %428 = vmatprep.subr.mxu0 0.0
      %429 = vmatpush1.msra.mxu0 0.0
      %430 = vmatprep.subr.mxu0 0.0
      %431 = vmatpush1.msra.mxu0 0.0
      %432 = vmatprep.subr.mxu0 0.0
      %433 = vmatpush1.msra.mxu0 0.0
      %434 = vmatprep.subr.mxu0 0.0
      %435 = vmatpush1.msra.mxu0 0.0
      %436 = vmatprep.subr.mxu0 0.0
      %437 = vmatpush1.msra.mxu0 0.0
      %438 = vmatprep.subr.mxu0 0.0
      %439 = vmatpush1.msra.mxu0 0.0
      %440 = vmatprep.subr.mxu0 0.0
      %441 = vmatpush1.msra.mxu0 0.0
      %442 = vmatprep.subr.mxu0 0.0
      %443 = vmatpush1.msra.mxu0 0.0
      %444 = vmatprep.subr.mxu0 0.0
      %445 = vmatpush1.msra.mxu0 0.0
      %446 = vmatprep.subr.mxu0 0.0
      %447 = vmatpush1.msra.mxu0 0.0
      %448 = vmatprep.subr.mxu0 0.0
      %449 = vmatpush1.msra.mxu0 0.0
      %450 = vmatprep.subr.mxu0 0.0
      %451 = vmatpush1.msra.mxu0 0.0
      %452 = vmatprep.mubr.f32.mxu0 0.0
      %453 = vmatmul.mubr.f32.gmra.mrb[0].mxu0 %v383
      %v454 = vpop.f32.mrb[0].mxu0
      %v455 = vadd.f32 %v379, %v454
      %v456 = vpop.f32.mrb[0].mxu0
      %457 = vmatprep.mubr.f32.mxu0 0.0
      %458 = vmatmul.mubr.f32.gmra.mrb[0].mxu0 %v386
      %v459 = vpop.f32.mrb[0].mxu0
      %v460 = vadd.f32 %v379, %v459
      %v461 = vpop.f32.mrb[0].mxu0
      %462 = vdwg.mxu0
      %v463 = vmax.f32 %v455, 0.0
      %v464 = vmax.f32 %v460, 0.0
      %465 = vst.msk [vmem:[%s347] sm:$0xff] %vm381, %v463
      %vm466 = vcmask 63488
      %467 = vst.msk [vmem:[%s347 + $0x8] sm:$0x7f] %vm466, %v464
      %v468 = vld [vmem:[%s342] sm:$0xff]
      %v469 = vld [vmem:[%s342 + $0x8] sm:$0x3f]
      %v470 = vld [vmem:[%s342 + $0x1] sm:$0xff]
      %v471 = vld [vmem:[%s342 + $0x9] sm:$0x3f]
      %v472 = vld [vmem:[%s342 + $0x2] sm:$0xff]
      %v473 = vld [vmem:[%s342 + $0xa] sm:$0x3f]
      %476 = vrot.lane.b32.xlu0 %v470, 4
      %v477 = vpop.permute.xlu0 %476
      %478 = vrot.lane.b32.xlu0 %v471, 4
      %v479 = vpop.permute.xlu0 %478
      %484 = vrot.lane.b32.xlu0 %v472, 8
      %v485 = vpop.permute.xlu0 %484
      %486 = vrot.lane.b32.xlu0 %v473, 8
      %v487 = vpop.permute.xlu0 %486
      %v490 = vsel %vm370, %v468, %v477
      %v491 = vsel %vm370, %v469, %v479
      %v492 = vsel %vm381, %v490, %v485
      %v493 = vsel %vm381, %v491, %v487
      %v494 = vld [vmem:[%s2] sm:$0xff]
      %v495 = vld [vmem:[%s2 + $0x8] sm:$0xf]
      %v496 = vld [vmem:[%s5] sm:$0x1]
      %v498 = vlaneseq
      %v499 = vshrl.u32 %v498, 7
      %v500 = vsub.s32 0, %v499
      %v501 = vrot.slane %v496, %v500
      %vm503 = vcmask 97280
      %v505 = vsel %vm503, %v492, 0
      %v508 = vsel %vm503, %v493, 0
      %vm510 = vcmask 1043456
      %v512 = vsel %vm510, %v495, 0
      %514 = vmatprep.subr.mxu0 0.0
      %515 = vmatpush1.msra.mxu0 %v494
      %516 = vmatprep.subr.mxu0 0.0
      %517 = vmatpush1.msra.mxu0 %v512
      %518 = vmatprep.subr.mxu0 0.0
      %519 = vmatpush1.msra.mxu0 0.0
      %520 = vmatprep.subr.mxu0 0.0
      %521 = vmatpush1.msra.mxu0 0.0
      %522 = vmatprep.subr.mxu0 0.0
      %523 = vmatpush1.msra.mxu0 0.0
      %524 = vmatprep.subr.mxu0 0.0
      %525 = vmatpush1.msra.mxu0 0.0
      %526 = vmatprep.subr.mxu0 0.0
      %527 = vmatpush1.msra.mxu0 0.0
      %528 = vmatprep.subr.mxu0 0.0
      %529 = vmatpush1.msra.mxu0 0.0
      %530 = vmatprep.subr.mxu0 0.0
      %531 = vmatpush1.msra.mxu0 0.0
      %532 = vmatprep.subr.mxu0 0.0
      %533 = vmatpush1.msra.mxu0 0.0
      %534 = vmatprep.subr.mxu0 0.0
      %535 = vmatpush1.msra.mxu0 0.0
      %536 = vmatprep.subr.mxu0 0.0
      %537 = vmatpush1.msra.mxu0 0.0
      %538 = vmatprep.subr.mxu0 0.0
      %539 = vmatpush1.msra.mxu0 0.0
      %540 = vmatprep.subr.mxu0 0.0
      %541 = vmatpush1.msra.mxu0 0.0
      %542 = vmatprep.subr.mxu0 0.0
      %543 = vmatpush1.msra.mxu0 0.0
      %544 = vmatprep.subr.mxu0 0.0
      %545 = vmatpush1.msra.mxu0 0.0
      %546 = vmatprep.subr.mxu0 0.0
      %547 = vmatpush1.msra.mxu0 0.0
      %548 = vmatprep.subr.mxu0 0.0
      %549 = vmatpush1.msra.mxu0 0.0
      %550 = vmatprep.subr.mxu0 0.0
      %551 = vmatpush1.msra.mxu0 0.0
      %552 = vmatprep.subr.mxu0 0.0
      %553 = vmatpush1.msra.mxu0 0.0
      %554 = vmatprep.subr.mxu0 0.0
      %555 = vmatpush1.msra.mxu0 0.0
      %556 = vmatprep.subr.mxu0 0.0
      %557 = vmatpush1.msra.mxu0 0.0
      %558 = vmatprep.subr.mxu0 0.0
      %559 = vmatpush1.msra.mxu0 0.0
      %560 = vmatprep.subr.mxu0 0.0
      %561 = vmatpush1.msra.mxu0 0.0
      %562 = vmatprep.subr.mxu0 0.0
      %563 = vmatpush1.msra.mxu0 0.0
      %564 = vmatprep.subr.mxu0 0.0
      %565 = vmatpush1.msra.mxu0 0.0
      %566 = vmatprep.subr.mxu0 0.0
      %567 = vmatpush1.msra.mxu0 0.0
      %568 = vmatprep.subr.mxu0 0.0
      %569 = vmatpush1.msra.mxu0 0.0
      %570 = vmatprep.subr.mxu0 0.0
      %571 = vmatpush1.msra.mxu0 0.0
      %572 = vmatprep.subr.mxu0 0.0
      %573 = vmatpush1.msra.mxu0 0.0
      %574 = vmatprep.subr.mxu0 0.0
      %575 = vmatpush1.msra.mxu0 0.0
      %576 = vmatprep.subr.mxu0 0.0
      %577 = vmatpush1.msra.mxu0 0.0
      %578 = vmatprep.mubr.f32.mxu0 0.0
      %579 = vmatmul.mubr.f32.gmra.mrb[0].mxu0 %v505
      %v580 = vpop.f32.mrb[0].mxu0
      %v581 = vadd.f32 %v501, %v580
      %v582 = vpop.f32.mrb[0].mxu0
      %583 = vmatprep.mubr.f32.mxu0 0.0
      %584 = vmatmul.mubr.f32.gmra.mrb[0].mxu0 %v508
      %v585 = vpop.f32.mrb[0].mxu0
      %v586 = vadd.f32 %v501, %v585
      %v587 = vpop.f32.mrb[0].mxu0
      %588 = vdwg.mxu0
      %v589 = vmax.f32 %v581, 0.0
      %v590 = vmax.f32 %v586, 0.0
      %591 = vst.msk [vmem:[%s352] sm:$0xff] %vm381, %v589
      %vm592 = vcmask 62464
      %593 = vst.msk [vmem:[%s352 + $0x8] sm:$0x3f] %vm592, %v590
      %v594 = vld [vmem:[%s342] sm:$0xff]
      %v595 = vld [vmem:[%s342 + $0x8] sm:$0x1f]
      %v596 = vld [vmem:[%s342 + $0x1] sm:$0xff]
      %v597 = vld [vmem:[%s342 + $0x9] sm:$0x1f]
      %v598 = vld [vmem:[%s342 + $0x2] sm:$0xff]
      %v599 = vld [vmem:[%s342 + $0xa] sm:$0x1f]
      %v600 = vld [vmem:[%s342 + $0x3] sm:$0xff]
      %v601 = vld [vmem:[%s342 + $0xb] sm:$0x1f]
      %604 = vrot.lane.b32.xlu0 %v596, 4
      %v605 = vpop.permute.xlu0 %604
      %606 = vrot.lane.b32.xlu0 %v597, 4
      %v607 = vpop.permute.xlu0 %606
      %612 = vrot.lane.b32.xlu0 %v598, 8
      %v613 = vpop.permute.xlu0 %612
      %614 = vrot.lane.b32.xlu0 %v599, 8
      %v615 = vpop.permute.xlu0 %614
      %620 = vrot.lane.b32.xlu0 %v600, 12
      %v621 = vpop.permute.xlu0 %620
      %622 = vrot.lane.b32.xlu0 %v601, 12
      %v623 = vpop.permute.xlu0 %622
      %v626 = vsel %vm370, %v594, %v605
      %v627 = vsel %vm370, %v595, %v607
      %v628 = vsel %vm381, %v626, %v613
      %v629 = vsel %vm381, %v627, %v615
      %v630 = vsel %vm503, %v628, %v621
      %v631 = vsel %vm503, %v629, %v623
      %v632 = vld [vmem:[%s3] sm:$0xff]
      %v633 = vld [vmem:[%s3 + $0x8] sm:$0xff]
      %v634 = vld [vmem:[%s6] sm:$0x1]
      %v636 = vlaneseq
      %v637 = vshrl.u32 %v636, 7
      %v638 = vsub.s32 0, %v637
      %v639 = vrot.slane %v634, %v638
      %vm641 = vcmask 130048
      %v643 = vsel %vm641, %v630, 0
      %v646 = vsel %vm641, %v631, 0
      %648 = vmatprep.subr.mxu0 0.0
      %649 = vmatpush1.msra.mxu0 %v632
      %650 = vmatprep.subr.mxu0 0.0
      %651 = vmatpush1.msra.mxu0 %v633
      %652 = vmatprep.subr.mxu0 0.0
      %653 = vmatpush1.msra.mxu0 0.0
      %654 = vmatprep.subr.mxu0 0.0
      %655 = vmatpush1.msra.mxu0 0.0
      %656 = vmatprep.subr.mxu0 0.0
      %657 = vmatpush1.msra.mxu0 0.0
      %658 = vmatprep.subr.mxu0 0.0
      %659 = vmatpush1.msra.mxu0 0.0
      %660 = vmatprep.subr.mxu0 0.0
      %661 = vmatpush1.msra.mxu0 0.0
      %662 = vmatprep.subr.mxu0 0.0
      %663 = vmatpush1.msra.mxu0 0.0
      %664 = vmatprep.subr.mxu0 0.0
      %665 = vmatpush1.msra.mxu0 0.0
      %666 = vmatprep.subr.mxu0 0.0
      %667 = vmatpush1.msra.mxu0 0.0
      %668 = vmatprep.subr.mxu0 0.0
      %669 = vmatpush1.msra.mxu0 0.0
      %670 = vmatprep.subr.mxu0 0.0
      %671 = vmatpush1.msra.mxu0 0.0
      %672 = vmatprep.subr.mxu0 0.0
      %673 = vmatpush1.msra.mxu0 0.0
      %674 = vmatprep.subr.mxu0 0.0
      %675 = vmatpush1.msra.mxu0 0.0
      %676 = vmatprep.subr.mxu0 0.0
      %677 = vmatpush1.msra.mxu0 0.0
      %678 = vmatprep.subr.mxu0 0.0
      %679 = vmatpush1.msra.mxu0 0.0
      %680 = vmatprep.subr.mxu0 0.0
      %681 = vmatpush1.msra.mxu0 0.0
      %682 = vmatprep.subr.mxu0 0.0
      %683 = vmatpush1.msra.mxu0 0.0
      %684 = vmatprep.subr.mxu0 0.0
      %685 = vmatpush1.msra.mxu0 0.0
      %686 = vmatprep.subr.mxu0 0.0
      %687 = vmatpush1.msra.mxu0 0.0
      %688 = vmatprep.subr.mxu0 0.0
      %689 = vmatpush1.msra.mxu0 0.0
      %690 = vmatprep.subr.mxu0 0.0
      %691 = vmatpush1.msra.mxu0 0.0
      %692 = vmatprep.subr.mxu0 0.0
      %693 = vmatpush1.msra.mxu0 0.0
      %694 = vmatprep.subr.mxu0 0.0
      %695 = vmatpush1.msra.mxu0 0.0
      %696 = vmatprep.subr.mxu0 0.0
      %697 = vmatpush1.msra.mxu0 0.0
      %698 = vmatprep.subr.mxu0 0.0
      %699 = vmatpush1.msra.mxu0 0.0
      %700 = vmatprep.subr.mxu0 0.0
      %701 = vmatpush1.msra.mxu0 0.0
      %702 = vmatprep.subr.mxu0 0.0
      %703 = vmatpush1.msra.mxu0 0.0
      %704 = vmatprep.subr.mxu0 0.0
      %705 = vmatpush1.msra.mxu0 0.0
      %706 = vmatprep.subr.mxu0 0.0
      %707 = vmatpush1.msra.mxu0 0.0
      %708 = vmatprep.subr.mxu0 0.0
      %709 = vmatpush1.msra.mxu0 0.0
      %710 = vmatprep.subr.mxu0 0.0
      %711 = vmatpush1.msra.mxu0 0.0
      %712 = vmatprep.mubr.f32.mxu0 0.0
      %713 = vmatmul.mubr.f32.gmra.mrb[0].mxu0 %v643
      %v714 = vpop.f32.mrb[0].mxu0
      %v715 = vadd.f32 %v639, %v714
      %v716 = vpop.f32.mrb[0].mxu0
      %717 = vmatprep.mubr.f32.mxu0 0.0
      %718 = vmatmul.mubr.f32.gmra.mrb[0].mxu0 %v646
      %v719 = vpop.f32.mrb[0].mxu0
      %v720 = vadd.f32 %v639, %v719
      %v721 = vpop.f32.mrb[0].mxu0
      %722 = vdwg.mxu0
      %v723 = vmax.f32 %v715, 0.0
      %v724 = vmax.f32 %v720, 0.0
      %725 = vst.msk [vmem:[%s357] sm:$0xff] %vm381, %v723
      %vm726 = vcmask 61440
      %727 = vst.msk [vmem:[%s357 + $0x8] sm:$0x1f] %vm726, %v724
      %p728 = scmp.lt.s32.totalorder %s21, 1
      %s729 = scalar_select %p728, %s21, 1
      %s730 = smul.addr %s729, 2
      %s731 = smul.addr %s730, 8
      %s732 = scalar_lea.vmem %s7, %s731
      %p733 = scmp.lt.s32.totalorder %s21, 1
      %s734 = scalar_select %p733, %s21, 1
      %s735 = smul.addr %s734, 2
      %s736 = smul.addr %s735, 8
      %s737 = scalar_lea.vmem %s8, %s736
      %p738 = scmp.lt.s32.totalorder %s21, 1
      %s739 = scalar_select %p738, %s21, 1
      %s740 = smul.addr %s739, 2
      %s741 = smul.addr %s740, 8
      %s742 = scalar_lea.vmem %s9, %s741
      // Predicated region
      $region49: #{tpu_custom_call.1} parent=47 // pred_check
        %p743 = pneg %p191
      $region50: #{tpu_custom_call.1} parent=47 // pred_check_branch
        %745 = sbr.rel (%p743) target = $region52
      $region51: #{tpu_custom_call.1} parent=47 // pred_region
        _
      $region52: #{tpu_custom_call.1} parent=47 // pred_fallthru
        _
      // Predicated region
      $region53: #{tpu_custom_call.1} parent=47 // pred_check
        %p746 = pneg %p217
      $region54: #{tpu_custom_call.1} parent=47 // pred_check_branch
        %748 = sbr.rel (%p746) target = $region56
      $region55: #{tpu_custom_call.1} parent=47 // pred_region
        _
      $region56: #{tpu_custom_call.1} parent=47 // pred_fallthru
        _
      // Predicated region
      $region57: #{tpu_custom_call.1} parent=47 // pred_check
        %p749 = pneg %p243
      $region58: #{tpu_custom_call.1} parent=47 // pred_check_branch
        %751 = sbr.rel (%p749) target = $region60
      $region59: #{tpu_custom_call.1} parent=47 // pred_region
        _
      $region60: #{tpu_custom_call.1} parent=47 // pred_fallthru
        _
    $region48: #{tpu_custom_call.1} parent=5 // pred_fallthru
      _
    %p752 = scmp.le.s32.totalorder 2, %s16
    // Predicated region
    $region61: #{tpu_custom_call.1} parent=5 // pred_check
      %p753 = pneg %p752
    $region62: #{tpu_custom_call.1} parent=5 // pred_check_branch
      %755 = sbr.rel (%p753) target = $region64
    $region63: #{tpu_custom_call.1} parent=5 // pred_region
      %s756 = ssub.s32 %s16, 2
      // Predicated region
      $region65: #{tpu_custom_call.1} parent=63 // pred_check
        %p757 = pneg %p197
      $region66: #{tpu_custom_call.1} parent=63 // pred_check_branch
        %759 = sbr.rel (%p757) target = $region68
      $region67: #{tpu_custom_call.1} parent=63 // pred_region
        %p760 = scmp.lt.s32.totalorder %s22, 1
        %s761 = scalar_select %p760, %s22, 1
        %s762 = smul.addr %s761, 2
        %s763 = smul.addr %s762, 8
        %s764 = scalar_lea.vmem %s7, %s763
      $region68: #{tpu_custom_call.1} parent=63 // pred_fallthru
        _
      // Predicated region
      $region69: #{tpu_custom_call.1} parent=63 // pred_check
        %p765 = pneg %p223
      $region70: #{tpu_custom_call.1} parent=63 // pred_check_branch
        %767 = sbr.rel (%p765) target = $region72
      $region71: #{tpu_custom_call.1} parent=63 // pred_region
        %p768 = scmp.lt.s32.totalorder %s22, 1
        %s769 = scalar_select %p768, %s22, 1
        %s770 = smul.addr %s769, 2
        %s771 = smul.addr %s770, 8
        %s772 = scalar_lea.vmem %s8, %s771
      $region72: #{tpu_custom_call.1} parent=63 // pred_fallthru
        _
      // Predicated region
      $region73: #{tpu_custom_call.1} parent=63 // pred_check
        %p773 = pneg %p249
      $region74: #{tpu_custom_call.1} parent=63 // pred_check_branch
        %775 = sbr.rel (%p773) target = $region76
      $region75: #{tpu_custom_call.1} parent=63 // pred_region
        %p776 = scmp.lt.s32.totalorder %s22, 1
        %s777 = scalar_select %p776, %s22, 1
        %s778 = smul.addr %s777, 2
        %s779 = smul.addr %s778, 8
        %s780 = scalar_lea.vmem %s9, %s779
      $region76: #{tpu_custom_call.1} parent=63 // pred_fallthru
        _
    $region64: #{tpu_custom_call.1} parent=5 // pred_fallthru
      _
  $region6: #{tpu_custom_call.1} parent=0 // loop_footer
    %s20 = sadd.s32 1, %s16
  $region7: #{tpu_custom_call.1} parent=0 // loop_footer_branch
    %15 = sbr.rel target = $region3
  $region8: #{tpu_custom_call.1} parent=0 // loop_exit
    _

</llo_original>
